<compile_context>
chip_gen: v7x
topology: tpu7x:2x2x1
jax: 0.10.0
libtpu: 0.0.40
codegen_flags: <defaults>
</compile_context>

<pallas_src>
import functools
import math

import jax
import jax.numpy as jnp
from jax.experimental import pallas as pl
from jax.experimental.pallas import tpu as pltpu


# ---------------------------------------------------------------------------
# Generation helpers
# ---------------------------------------------------------------------------

def _tensorcores_per_chip():
    """v7x exposes 2 TensorCores per chip; earlier generations have 1."""
    try:
        kind = jax.devices()[0].device_kind.lower()
    except Exception:
        return 1
    return 2 if "v7" in kind else 1


def _row_block(n_rows, *, max_rows=1024):
    """Row tile for the memory-bound LayerNorm / residual-add kernels.

    Single-TC chips (v5e/v6e): grid steps are a serial loop, so take the largest
    VMEM-friendly tile (>=512 rows reaches ~85% of HBM roofline in measurements).
    Dual-TC chips (v7x): leave >= 2 grid steps so both TensorCores get work.
    """
    if n_rows % 8 != 0:
        return n_rows                       # full-extent block is always legal
    if _tensorcores_per_chip() > 1 and n_rows >= 16:
        rb = max(8, ((n_rows + 1) // 2) // 8 * 8)
        return min(rb, max_rows)
    return min(max_rows, n_rows)


# ---------------------------------------------------------------------------
# Standalone LayerNorm + residual-add kernels (generic-sublayer fallback path)
# ---------------------------------------------------------------------------

def layernorm_kernel(x_ref, alpha_ref, bias_ref, o_ref, *, eps):
    x = x_ref[...].astype(jnp.float32)                      # (Rb, D)
    d = x.shape[-1]
    mean = jnp.mean(x, axis=-1, keepdims=True)
    centered = x - mean
    # torch.Tensor.std defaults to the *unbiased* estimator (divide by d-1),
    # and eps is added to std (not to var).
    var = jnp.sum(centered * centered, axis=-1, keepdims=True) / (d - 1)
    r = 1.0 / (jnp.sqrt(var) + eps)          # one exact divide per row, not per element
    o_ref[...] = (alpha_ref[...] * (centered * r) + bias_ref[...]).astype(o_ref.dtype)


def residual_add_kernel(x_ref, y_ref, o_ref):
    # Dropout in eval mode is the identity.
    # TODO(synk): training-mode dropout (pltpu.prng_seed + pltpu.stateful_bernoulli)
    # is not wired up; eval/inference semantics are kept here.
    o_ref[...] = x_ref[...] + y_ref[...]


def layer_norm(x, alpha, bias, *, eps=1e-6):
    """x: (..., D) f32; alpha, bias: (D,)."""
    orig_shape = x.shape
    D = orig_shape[-1]
    x2 = x.reshape(-1, D)
    N = x2.shape[0]
    rb = _row_block(N)
    grid = (pl.cdiv(N, rb),)

    out = pl.pallas_call(
        functools.partial(layernorm_kernel, eps=eps),
        out_shape=jax.ShapeDtypeStruct((N, D), x.dtype),
        grid=grid,
        in_specs=[pl.BlockSpec((rb, D), lambda i: (i, 0)),
                  pl.BlockSpec((1, D), lambda i: (0, 0)),
                  pl.BlockSpec((1, D), lambda i: (0, 0))],
        out_specs=pl.BlockSpec((rb, D), lambda i: (i, 0)),
        compiler_params=pltpu.CompilerParams(dimension_semantics=("parallel",)),
    )(x2, alpha.reshape(1, D), bias.reshape(1, D))
    return out.reshape(orig_shape)


def add_residual(x, y):
    """x + dropout(y) with eval-mode (identity) dropout."""
    orig_shape = x.shape
    D = orig_shape[-1]
    x2 = x.reshape(-1, D)
    y2 = y.reshape(-1, D)
    N = x2.shape[0]
    rb = _row_block(N)
    grid = (pl.cdiv(N, rb),)

    out = pl.pallas_call(
        residual_add_kernel,
        out_shape=jax.ShapeDtypeStruct((N, D), x.dtype),
        grid=grid,
        in_specs=[pl.BlockSpec((rb, D), lambda i: (i, 0)),
                  pl.BlockSpec((rb, D), lambda i: (i, 0))],
        out_specs=pl.BlockSpec((rb, D), lambda i: (i, 0)),
        compiler_params=pltpu.CompilerParams(dimension_semantics=("parallel",)),
    )(x2, y2)
    return out.reshape(orig_shape)


def residual_connection(x, sublayer, alpha, bias, *, eps=1e-6):
    """Generic ResidualConnection: x + dropout(sublayer(norm(x))) for an arbitrary
    JAX `sublayer`.  (The self-attention case uses the fused kernel below.)"""
    normed = layer_norm(x, alpha, bias, eps=eps)
    y = sublayer(normed)
    return add_residual(x, y)


# ---------------------------------------------------------------------------
# Fully-fused ResidualConnection(x, self-attention):
#   LayerNorm + multi-head causal attention + residual add in ONE pallas_call.
# ---------------------------------------------------------------------------

def fused_ln_mha_residual_kernel(x_ref, alpha_ref, beta_ref,
                                 wqkv_ref, bqkv_ref, wo_ref, bo_ref,
                                 o_ref, *, num_heads, d_k, eps):
    Bb, S, D = x_ref.shape
    H = num_heads
    R = Bb * S
    mxu = wqkv_ref.dtype                     # bf16 operands for MXU, f32 accumulation

    x = x_ref[...].astype(jnp.float32)       # (Bb, S, D) -- also the residual
    rows = x.reshape(R, D)                   # lane-dense (rows, D)

    # ---- LayerNorm (torch semantics: unbiased std, eps added to std) ----
    mean = jnp.mean(rows, axis=-1, keepdims=True)
    centered = rows - mean
    var = jnp.sum(centered * centered, axis=-1, keepdims=True) / (D - 1)
    r = 1.0 / (jnp.sqrt(var) + eps)          # exact per-row reciprocal
    normed = alpha_ref[...] * (centered * r) + beta_ref[...]          # (R, D)

    # ---- fused QKV projection: one full-width (R, D) @ (D, 3D) MXU matmul ----
    qkv = jnp.dot(normed.astype(mxu), wqkv_ref[...],
                  preferred_element_type=jnp.float32) + bqkv_ref[...]  # (R, 3D)

    scale = 1.0 / math.sqrt(d_k)

    def to_heads(m):                         # (R, D) -> (Bb*H, S, d_k): layout plumbing
        return m.reshape(Bb, S, H, d_k).transpose(0, 2, 1, 3).reshape(Bb * H, S, d_k)

    Q = to_heads(qkv[:, :D]) * scale         # fold 1/sqrt(d_k) into Q once
    K = to_heads(qkv[:, D:2 * D])
    V = to_heads(qkv[:, 2 * D:])

    # ---- head-batched attention scores (single batch dim, contraction over d_k) ----
    scores = jnp.einsum('gqd,gkd->gqk', Q, K,
                        preferred_element_type=jnp.float32)            # (Bb*H, S, S)

    # Causal mask from a single (S, S) iota pair, broadcast over (batch, head).
    row = jax.lax.broadcasted_iota(jnp.int32, (S, S), 0)
    col = jax.lax.broadcasted_iota(jnp.int32, (S, S), 1)
    scores = jnp.where((col <= row)[None], scores, jnp.float32(-1e9))

    # TODO(synk): at production S, tile over KV blocks with an online softmax
    # (flash-style), single-buffer the constant-index weight specs
    # (pipeline_mode=pl.Buffered(1)) and set vmem_limit_bytes -- needed for the
    # 64 MiB VMEM budget on v7x; unnecessary at these demo sizes.
    m = jnp.max(scores, axis=-1, keepdims=True)
    p = jnp.exp(scores - m)
    p = p * pl.reciprocal(jnp.sum(p, axis=-1, keepdims=True), approx=True)

    # TODO(synk): attention dropout omitted (inference / eval semantics).
    ctx = jnp.einsum('gqk,gkd->gqd', p, V,
                     preferred_element_type=jnp.float32)                # (Bb*H, S, d_k)

    # Back to lane-dense (rows, D) and one full-width output projection.
    ctx2 = ctx.reshape(Bb, H, S, d_k).transpose(0, 2, 1, 3).reshape(R, D)
    out = jnp.dot(ctx2.astype(mxu), wo_ref[...],
                  preferred_element_type=jnp.float32) + bo_ref[...]     # (R, D)

    # ---- fused residual add; lane-dense (Bb, S, D) store ----
    o_ref[...] = (x + out.reshape(Bb, S, D)).astype(o_ref.dtype)


def fused_residual_mha(x, alpha, beta, mha_params, *, num_heads, eps=1e-6,
                       mxu_dtype=jnp.bfloat16):
    """Fused forward of ResidualConnection(x, causal self-attention):
       x + MHA(LayerNorm(x)), eval-mode dropout (identity).

    x: (B, S, D) f32.  Weights are (in, out) == PyTorch W.T; biases (D,)."""
    B, S, D = x.shape
    d_k = D // num_heads
    wq, bq, wk, bk, wv, bv, wo, bo = mha_params

    # Wrapper-side layout plumbing (free at trace time): stack Wq|Wk|Wv so the
    # kernel does a single lane-dense (rows, D) @ (D, 3D) projection matmul.
    wqkv = jnp.concatenate([wq, wk, wv], axis=1).astype(mxu_dtype)     # (D, 3D)
    bqkv = jnp.concatenate([bq, bk, bv]).reshape(1, 3 * D).astype(jnp.float32)
    wo2 = wo.astype(mxu_dtype)                                          # (D, D)
    bo2 = bo.reshape(1, D).astype(jnp.float32)
    a2 = alpha.reshape(1, D).astype(jnp.float32)
    b2 = beta.reshape(1, D).astype(jnp.float32)

    # Batch tiling: >= 2 parallel grid steps only on dual-TC chips (v7x);
    # single-TC chips take everything in one step (more rows under each MXU op,
    # no extra ~0.35us step overhead).
    if _tensorcores_per_chip() > 1 and B >= 2 and B % 2 == 0:
        Bb = B // 2
    else:
        Bb = B
    grid = (B // Bb,)

    kernel = functools.partial(fused_ln_mha_residual_kernel,
                               num_heads=num_heads, d_k=d_k, eps=eps)

    x_spec = pl.BlockSpec((Bb, S, D), lambda b: (b, 0, 0))
    def vec_spec(n):
        return pl.BlockSpec((1, n), lambda b: (0, 0))

    return pl.pallas_call(
        kernel,
        out_shape=jax.ShapeDtypeStruct((B, S, D), x.dtype),
        grid=grid,
        in_specs=[x_spec,
                  vec_spec(D), vec_spec(D),
                  pl.BlockSpec((D, 3 * D), lambda b: (0, 0)),
                  vec_spec(3 * D),
                  pl.BlockSpec((D, D), lambda b: (0, 0)),
                  vec_spec(D)],
        out_specs=x_spec,
        compiler_params=pltpu.CompilerParams(dimension_semantics=("parallel",)),
    )(x, a2, b2, wqkv, bqkv, wo2, bo2)


# ---------------------------------------------------------------------------
# Pure-JAX references mirroring the PyTorch forward (eval mode)
# ---------------------------------------------------------------------------

def reference_mha(x, params, *, num_heads, mxu_dtype=jnp.bfloat16):
    """Causal multi-head self-attention on already-normed input (mirrors the
    kernel's intentional bf16 MXU operands)."""
    B, S, D = x.shape
    d_k = D // num_heads
    wq, bq, wk, bk, wv, bv, wo, bo = params
    cast = lambda a: a.astype(mxu_dtype)

    def proj(w, b):
        y = jnp.einsum('bsd,dk->bsk', cast(x), cast(w),
                       preferred_element_type=jnp.float32) + b
        return y.reshape(B, S, num_heads, d_k).transpose(0, 2, 1, 3)

    Q = proj(wq, bq) / math.sqrt(d_k)
    K = proj(wk, bk)
    V = proj(wv, bv)
    scores = jnp.einsum('bhqd,bhkd->bhqk', Q, K, preferred_element_type=jnp.float32)
    causal = jnp.tril(jnp.ones((S, S), dtype=bool))
    scores = jnp.where(causal, scores, -1e9)
    attn = jax.nn.softmax(scores, axis=-1)
    ctx = jnp.einsum('bhqk,bhkd->bhqd', attn, V, preferred_element_type=jnp.float32)
    ctx = ctx.transpose(0, 2, 1, 3).reshape(B, S, D)
    return jnp.einsum('bsd,dm->bsm', cast(ctx), cast(wo),
                      preferred_element_type=jnp.float32) + bo


def reference_residual_connection(x, sublayer, alpha, bias, eps):
    d = x.shape[-1]
    mean = jnp.mean(x, axis=-1, keepdims=True)
    var = jnp.sum((x - mean) ** 2, axis=-1, keepdims=True) / (d - 1)   # unbiased, as torch.std
    std = jnp.sqrt(var)
    normed = alpha * (x - mean) / (std + eps) + bias
    return x + sublayer(normed)            # eval-mode dropout == identity


# ---------------------------------------------------------------------------

if __name__ == "__main__":
    B, S, D, H = 2, 8, 128, 4              # batch, seq, d_model (lane-dense), heads
    eps = 1e-6

    key = jax.random.PRNGKey(0)
    ks = jax.random.split(key, 11)

    x = jax.random.normal(ks[0], (B, S, D), dtype=jnp.float32)
    alpha = 1.0 + 0.1 * jax.random.normal(ks[1], (D,), dtype=jnp.float32)
    beta = 0.1 * jax.random.normal(ks[2], (D,), dtype=jnp.float32)

    bound = 1.0 / math.sqrt(D)

    def make_linear(kw, kb):
        w = jax.random.uniform(kw, (D, D), jnp.float32, -bound, bound)
        b = jax.random.uniform(kb, (D,), jnp.float32, -bound, bound)
        return w, b

    wq, bq = make_linear(ks[3], ks[4])
    wk, bk = make_linear(ks[5], ks[6])
    wv, bv = make_linear(ks[7], ks[8])
    wo, bo = make_linear(ks[9], ks[10])
    mha_params = (wq, bq, wk, bk, wv, bv, wo, bo)

    # ---- fused path: ResidualConnection with a causal self-attention sublayer ----
    out = fused_residual_mha(x, alpha, beta, mha_params, num_heads=H, eps=eps)
    out = jax.block_until_ready(out)

    ref = reference_residual_connection(
        x, lambda z: reference_mha(z, mha_params, num_heads=H), alpha, beta, eps)

    assert out.shape == (B, S, D)
    max_err = float(jnp.max(jnp.abs(out - ref)))
    # Tolerance covers bf16 MXU operands (mirrored in the reference) plus the
    # approx-reciprocal softmax denominator (~1.2e-4 relative).
    assert jnp.allclose(out, ref, atol=2e-3, rtol=2e-3), \
        f"fused path mismatch vs reference (max err {max_err})"

    # ---- generic path: ResidualConnection with an arbitrary JAX sublayer ----
    sub = lambda z: 0.5 * jnp.tanh(z)
    out2 = residual_connection(x, sub, alpha, beta, eps=eps)
    out2 = jax.block_until_ready(out2)
    ref2 = reference_residual_connection(x, sub, alpha, beta, eps)
    max_err2 = float(jnp.max(jnp.abs(out2 - ref2)))
    assert jnp.allclose(out2, ref2, atol=1e-4, rtol=1e-4), \
        f"generic path mismatch vs reference (max err {max_err2})"

    print("KERNEL_OK")
</pallas_src>

<mosaic_0001>
module attributes {stable_mosaic.version = 11 : i64} {
  func.func @fused_ln_mha_residual_kernel(%arg0: i32, %arg1: memref<2x8x128xf32, #tpu.memory_space<vmem>>, %arg2: memref<1x128xf32, #tpu.memory_space<vmem>>, %arg3: memref<1x128xf32, #tpu.memory_space<vmem>>, %arg4: memref<128x384xbf16, #tpu.memory_space<vmem>>, %arg5: memref<1x384xf32, #tpu.memory_space<vmem>>, %arg6: memref<128x128xbf16, #tpu.memory_space<vmem>>, %arg7: memref<1x128xf32, #tpu.memory_space<vmem>>, %arg8: memref<2x8x128xf32, #tpu.memory_space<vmem>>) attributes {dimension_semantics = [#tpu.dimension_semantics<parallel>], iteration_bounds = array<i64: 1>, scalar_prefetch = 0 : i64, scratch_operands = 0 : i64, tpu.core_type = #tpu.core_type<tc>, window_params = [{transform_indices = @transform_0, window_bounds = array<i64: 2, 8, 128>}, {pipeline_mode = #tpu.pipeline_mode<synchronous>, transform_indices = @transform_1, window_bounds = array<i64: 1, 128>}, {pipeline_mode = #tpu.pipeline_mode<synchronous>, transform_indices = @transform_2, window_bounds = array<i64: 1, 128>}, {pipeline_mode = #tpu.pipeline_mode<synchronous>, transform_indices = @transform_3, window_bounds = array<i64: 128, 384>}, {pipeline_mode = #tpu.pipeline_mode<synchronous>, transform_indices = @transform_4, window_bounds = array<i64: 1, 384>}, {pipeline_mode = #tpu.pipeline_mode<synchronous>, transform_indices = @transform_5, window_bounds = array<i64: 128, 128>}, {pipeline_mode = #tpu.pipeline_mode<synchronous>, transform_indices = @transform_6, window_bounds = array<i64: 1, 128>}, {transform_indices = @transform_7, window_bounds = array<i64: 2, 8, 128>}]} {
    %c0 = arith.constant 0 : index
    %c0_0 = arith.constant 0 : index
    %c0_1 = arith.constant 0 : index
    %0 = vector.load %arg1[%c0, %c0_0, %c0_1] : memref<2x8x128xf32, #tpu.memory_space<vmem>>, vector<2x8x128xf32>
    %1 = vector.shape_cast %0 : vector<2x8x128xf32> to vector<16x128xf32>
    %cst = arith.constant dense<0.000000e+00> : vector<16xf32>
    %2 = vector.multi_reduction <add>, %1, %cst [1] : vector<16x128xf32> to vector<16xf32>
    %3 = vector.shape_cast %2 : vector<16xf32> to vector<16x1xf32>
    %cst_2 = arith.constant 1.280000e+02 : f32
    %4 = vector.broadcast %cst_2 : f32 to vector<16x1xf32>
    %5 = arith.divf %3, %4 : vector<16x1xf32>
    %6 = vector.broadcast %5 : vector<16x1xf32> to vector<16x128xf32>
    %7 = arith.subf %1, %6 : vector<16x128xf32>
    %8 = arith.mulf %7, %7 : vector<16x128xf32>
    %cst_3 = arith.constant dense<0.000000e+00> : vector<16xf32>
    %9 = vector.multi_reduction <add>, %8, %cst_3 [1] : vector<16x128xf32> to vector<16xf32>
    %10 = vector.shape_cast %9 : vector<16xf32> to vector<16x1xf32>
    %cst_4 = arith.constant 1.270000e+02 : f32
    %11 = vector.broadcast %cst_4 : f32 to vector<16x1xf32>
    %12 = arith.divf %10, %11 : vector<16x1xf32>
    %13 = math.sqrt %12 : vector<16x1xf32>
    %cst_5 = arith.constant 9.99999997E-7 : f32
    %14 = vector.broadcast %cst_5 : f32 to vector<16x1xf32>
    %15 = arith.addf %13, %14 : vector<16x1xf32>
    %cst_6 = arith.constant 1.000000e+00 : f32
    %16 = vector.broadcast %cst_6 : f32 to vector<16x1xf32>
    %17 = arith.divf %16, %15 : vector<16x1xf32>
    %c0_7 = arith.constant 0 : index
    %c0_8 = arith.constant 0 : index
    %18 = vector.load %arg2[%c0_7, %c0_8] : memref<1x128xf32, #tpu.memory_space<vmem>>, vector<1x128xf32>
    %19 = vector.broadcast %17 : vector<16x1xf32> to vector<16x128xf32>
    %20 = arith.mulf %7, %19 : vector<16x128xf32>
    %21 = vector.broadcast %18 : vector<1x128xf32> to vector<16x128xf32>
    %22 = arith.mulf %21, %20 : vector<16x128xf32>
    %c0_9 = arith.constant 0 : index
    %c0_10 = arith.constant 0 : index
    %23 = vector.load %arg3[%c0_9, %c0_10] : memref<1x128xf32, #tpu.memory_space<vmem>>, vector<1x128xf32>
    %24 = vector.broadcast %23 : vector<1x128xf32> to vector<16x128xf32>
    %25 = arith.addf %22, %24 : vector<16x128xf32>
    %26 = arith.truncf %25 : vector<16x128xf32> to vector<16x128xbf16>
    %c0_11 = arith.constant 0 : index
    %c0_12 = arith.constant 0 : index
    %27 = vector.load %arg4[%c0_11, %c0_12] : memref<128x384xbf16, #tpu.memory_space<vmem>>, vector<128x384xbf16>
    %cst_13 = arith.constant dense<0.000000e+00> : vector<16x384xf32>
    %28 = tpu.matmul %26, %27, %cst_13 {dimension_numbers = #tpu.dot_dimension_numbers<[1], [0], [0], [1], [0, 0, 1, 1], [], []>} : vector<16x128xbf16>, vector<128x384xbf16>, vector<16x384xf32> -> vector<16x384xf32>
    %c0_14 = arith.constant 0 : index
    %c0_15 = arith.constant 0 : index
    %29 = vector.load %arg5[%c0_14, %c0_15] : memref<1x384xf32, #tpu.memory_space<vmem>>, vector<1x384xf32>
    %30 = vector.broadcast %29 : vector<1x384xf32> to vector<16x384xf32>
    %31 = arith.addf %28, %30 : vector<16x384xf32>
    %32 = vector.extract_strided_slice %31 {offsets = [0, 0], sizes = [16, 128], strides = [1, 1]} : vector<16x384xf32> to vector<16x128xf32>
    %33 = vector.shape_cast %32 : vector<16x128xf32> to vector<2x8x4x32xf32>
    %34 = tpu.transpose %33, [0, 2, 1, 3] : vector<2x8x4x32xf32> -> vector<2x4x8x32xf32>
    %35 = vector.shape_cast %34 : vector<2x4x8x32xf32> to vector<8x8x32xf32>
    %cst_16 = arith.constant 0.176776692 : f32
    %36 = vector.broadcast %cst_16 : f32 to vector<8x8x32xf32>
    %37 = arith.mulf %35, %36 : vector<8x8x32xf32>
    %38 = vector.extract_strided_slice %31 {offsets = [0, 128], sizes = [16, 128], strides = [1, 1]} : vector<16x384xf32> to vector<16x128xf32>
    %39 = vector.shape_cast %38 : vector<16x128xf32> to vector<2x8x4x32xf32>
    %40 = tpu.transpose %39, [0, 2, 1, 3] : vector<2x8x4x32xf32> -> vector<2x4x8x32xf32>
    %41 = vector.shape_cast %40 : vector<2x4x8x32xf32> to vector<8x8x32xf32>
    %42 = vector.extract_strided_slice %31 {offsets = [0, 256], sizes = [16, 128], strides = [1, 1]} : vector<16x384xf32> to vector<16x128xf32>
    %43 = vector.shape_cast %42 : vector<16x128xf32> to vector<2x8x4x32xf32>
    %44 = tpu.transpose %43, [0, 2, 1, 3] : vector<2x8x4x32xf32> -> vector<2x4x8x32xf32>
    %45 = vector.shape_cast %44 : vector<2x4x8x32xf32> to vector<8x8x32xf32>
    "tpu.trace_start"() <{level = 10 : i32, message = "gqd,gkd->gqk"}> : () -> ()
    %cst_17 = arith.constant dense<0.000000e+00> : vector<8x8x8xf32>
    %46 = tpu.matmul %37, %41, %cst_17 {dimension_numbers = #tpu.dot_dimension_numbers<[2], [2], [1], [1], [0, 0, 0, 1, 1, 1], [0], [0]>} : vector<8x8x32xf32>, vector<8x8x32xf32>, vector<8x8x8xf32> -> vector<8x8x8xf32>
    "tpu.trace_stop"() : () -> ()
    %47 = tpu.iota {dimensions = array<i32: 0>} : vector<8x8xi32>
    %48 = tpu.iota {dimensions = array<i32: 1>} : vector<8x8xi32>
    %49 = arith.cmpi sle, %48, %47 : vector<8x8xi32>
    %50 = vector.shape_cast %49 : vector<8x8xi1> to vector<1x8x8xi1>
    %cst_18 = arith.constant -1.000000e+09 : f32
    %51 = vector.shape_cast %50 : vector<1x8x8xi1> to vector<1x8x8xi1>
    %52 = vector.broadcast %51 : vector<1x8x8xi1> to vector<8x8x8xi1>
    %53 = vector.broadcast %cst_18 : f32 to vector<8x8x8xf32>
    %54 = arith.select %52, %46, %53 : vector<8x8x8xi1>, vector<8x8x8xf32>
    %cst_19 = arith.constant dense<0xFF800000> : vector<8x8xf32>
    %55 = vector.multi_reduction <maximumf>, %54, %cst_19 [2] : vector<8x8x8xf32> to vector<8x8xf32>
    %56 = vector.shape_cast %55 : vector<8x8xf32> to vector<8x8x1xf32>
    %57 = vector.broadcast %56 : vector<8x8x1xf32> to vector<8x8x8xf32>
    %58 = arith.subf %54, %57 : vector<8x8x8xf32>
    %59 = math.exp %58 : vector<8x8x8xf32>
    %cst_20 = arith.constant dense<0.000000e+00> : vector<8x8xf32>
    %60 = vector.multi_reduction <add>, %59, %cst_20 [2] : vector<8x8x8xf32> to vector<8x8xf32>
    %61 = vector.shape_cast %60 : vector<8x8xf32> to vector<8x8x1xf32>
    %62 = tpu.reciprocal %61 {approx = true} : vector<8x8x1xf32> -> vector<8x8x1xf32>
    %63 = vector.broadcast %62 : vector<8x8x1xf32> to vector<8x8x8xf32>
    %64 = arith.mulf %59, %63 : vector<8x8x8xf32>
    "tpu.trace_start"() <{level = 10 : i32, message = "gqk,gkd->gqd"}> : () -> ()
    %cst_21 = arith.constant dense<0.000000e+00> : vector<8x8x32xf32>
    %65 = tpu.matmul %64, %45, %cst_21 {dimension_numbers = #tpu.dot_dimension_numbers<[2], [1], [1], [2], [0, 0, 0, 1, 1, 2], [0], [0]>} : vector<8x8x8xf32>, vector<8x8x32xf32>, vector<8x8x32xf32> -> vector<8x8x32xf32>
    "tpu.trace_stop"() : () -> ()
    %66 = vector.shape_cast %65 : vector<8x8x32xf32> to vector<2x4x8x32xf32>
    %67 = tpu.transpose %66, [0, 2, 1, 3] : vector<2x4x8x32xf32> -> vector<2x8x4x32xf32>
    %68 = vector.shape_cast %67 : vector<2x8x4x32xf32> to vector<16x128xf32>
    %69 = arith.truncf %68 : vector<16x128xf32> to vector<16x128xbf16>
    %c0_22 = arith.constant 0 : index
    %c0_23 = arith.constant 0 : index
    %70 = vector.load %arg6[%c0_22, %c0_23] : memref<128x128xbf16, #tpu.memory_space<vmem>>, vector<128x128xbf16>
    %cst_24 = arith.constant dense<0.000000e+00> : vector<16x128xf32>
    %71 = tpu.matmul %69, %70, %cst_24 {dimension_numbers = #tpu.dot_dimension_numbers<[1], [0], [0], [1], [0, 0, 1, 1], [], []>} : vector<16x128xbf16>, vector<128x128xbf16>, vector<16x128xf32> -> vector<16x128xf32>
    %c0_25 = arith.constant 0 : index
    %c0_26 = arith.constant 0 : index
    %72 = vector.load %arg7[%c0_25, %c0_26] : memref<1x128xf32, #tpu.memory_space<vmem>>, vector<1x128xf32>
    %73 = vector.broadcast %72 : vector<1x128xf32> to vector<16x128xf32>
    %74 = arith.addf %71, %73 : vector<16x128xf32>
    %75 = vector.shape_cast %74 : vector<16x128xf32> to vector<2x8x128xf32>
    %76 = arith.addf %0, %75 : vector<2x8x128xf32>
    %c0_27 = arith.constant 0 : index
    %c0_28 = arith.constant 0 : index
    %c0_29 = arith.constant 0 : index
    %77 = vector.load %arg8[%c0_27, %c0_28, %c0_29] : memref<2x8x128xf32, #tpu.memory_space<vmem>>, vector<2x8x128xf32>
    tpu.vector_store %arg8[%c0_27, %c0_28, %c0_29], %76 {strides = array<i32>} : memref<2x8x128xf32, #tpu.memory_space<vmem>>, vector<2x8x128xf32>,
    return
  }
  func.func @transform_0(%arg0: i32) -> (i32, i32, i32) {
    %c0_i32 = arith.constant 0 : i32
    %c0_i32_0 = arith.constant 0 : i32
    %c0_i32_1 = arith.constant 0 : i32
    return %arg0, %c0_i32, %c0_i32_0 : i32, i32, i32
  }
  func.func @transform_1(%arg0: i32) -> (i32, i32) {
    %c0_i32 = arith.constant 0 : i32
    %c0_i32_0 = arith.constant 0 : i32
    %c0_i32_1 = arith.constant 0 : i32
    return %c0_i32, %c0_i32_0 : i32, i32
  }
  func.func @transform_2(%arg0: i32) -> (i32, i32) {
    %c0_i32 = arith.constant 0 : i32
    %c0_i32_0 = arith.constant 0 : i32
    %c0_i32_1 = arith.constant 0 : i32
    return %c0_i32, %c0_i32_0 : i32, i32
  }
  func.func @transform_3(%arg0: i32) -> (i32, i32) {
    %c0_i32 = arith.constant 0 : i32
    %c0_i32_0 = arith.constant 0 : i32
    %c0_i32_1 = arith.constant 0 : i32
    return %c0_i32, %c0_i32_0 : i32, i32
  }
  func.func @transform_4(%arg0: i32) -> (i32, i32) {
    %c0_i32 = arith.constant 0 : i32
    %c0_i32_0 = arith.constant 0 : i32
    %c0_i32_1 = arith.constant 0 : i32
    return %c0_i32, %c0_i32_0 : i32, i32
  }
  func.func @transform_5(%arg0: i32) -> (i32, i32) {
    %c0_i32 = arith.constant 0 : i32
    %c0_i32_0 = arith.constant 0 : i32
    %c0_i32_1 = arith.constant 0 : i32
    return %c0_i32, %c0_i32_0 : i32, i32
  }
  func.func @transform_6(%arg0: i32) -> (i32, i32) {
    %c0_i32 = arith.constant 0 : i32
    %c0_i32_0 = arith.constant 0 : i32
    %c0_i32_1 = arith.constant 0 : i32
    return %c0_i32, %c0_i32_0 : i32, i32
  }
  func.func @transform_7(%arg0: i32) -> (i32, i32, i32) {
    %c0_i32 = arith.constant 0 : i32
    %c0_i32_0 = arith.constant 0 : i32
    %c0_i32_1 = arith.constant 0 : i32
    return %arg0, %c0_i32, %c0_i32_0 : i32, i32, i32
  }
}

</mosaic_0001>

<llo_original>
// kernel: tpu_custom_call.1
$region0: #{tpu_custom_call.1}
  #allocation0 [shape = 'u32[]', space=smem, size = 0x4, offset = 0x4, fixed_abs, tag = 'smem constant byte address 0x4 - core index']
  #allocation1 [shape = 'u32[144,128]{1,0:T(1,128)}', space=vmem, size = 0x12000, scoped, tag = 'internal scratch']
  %s0 = inlined_call_operand.hbm [shape: f32[2,8,128], index: 0, kind: input, shape index: {}]
  %s1 = inlined_call_operand.vmem [shape: f32[1,128], index: 1, kind: input, shape index: {}]
  %s2 = inlined_call_operand.vmem [shape: f32[1,128], index: 2, kind: input, shape index: {}]
  %s3 = inlined_call_operand.hbm [shape: bf16[128,384], index: 3, kind: input, shape index: {}]
  %s4 = inlined_call_operand.vmem [shape: f32[1,384], index: 4, kind: input, shape index: {}]
  %s5 = inlined_call_operand.hbm [shape: bf16[128,128], index: 5, kind: input, shape index: {}]
  %s6 = inlined_call_operand.vmem [shape: f32[1,128], index: 6, kind: input, shape index: {}]
  %s7 = inlined_call_operand.hbm [shape: f32[2,8,128], index: 7, kind: output, shape index: {}]
  %s8 = sld [smem:[#allocation0]]
  $region50: #{tpu_custom_call.1} parent=0
    _
  %s10 = ssub.s32 1, %s8
  %s11 = scalar_select 0, %s10, %s8
  $region1: #{tpu_custom_call.1} parent=0
    #allocation2 [shape = 'u8[8192]{0}', space=vmem, size = 0x2000, scoped, tag = 'input window, operand 0, single buffered']
    #allocation3 [shape = 's32[1]{0}', space=sflag, size = 0x4, scoped, tag = 'scoped memory for tpu_custom_call.1']
    #allocation4 [shape = 's32[1]{0}', space=sflag, size = 0x4, scoped, tag = 'scoped memory for tpu_custom_call.1']
    #allocation5 [shape = 'u8[98304]{0}', space=vmem, size = 0x18000, scoped, tag = 'input window, operand 3, single buffered']
    #allocation6 [shape = 's32[1]{0}', space=sflag, size = 0x4, scoped, tag = 'scoped memory for tpu_custom_call.1']
    #allocation7 [shape = 'u8[32768]{0}', space=vmem, size = 0x8000, scoped, tag = 'input window, operand 5, single buffered']
    #allocation8 [shape = 'u8[8192]{0}', space=vmem, size = 0x2000, scoped, tag = 'output window, operand 0, single buffered']
    %12 = vsyncpa [#allocation3], 0
    %13 = vsyncpa [#allocation6], 0
    %14 = vsyncpa [#allocation4], 0
    // Predicated region
    $region2: #{tpu_custom_call.1} parent=1 // pred_check
      _
    $region3: #{tpu_custom_call.1} parent=1 // pred_check_branch
      %16 = sbr.rel (0) target = $region5
    $region4: #{tpu_custom_call.1} parent=1 // pred_region
      %s18 = ssub.s32 256, 256
      %19 = vsyncadd [#allocation3], %s18
      %s20 = sshll.u32 [#allocation2], 4
      %s21 = int_to_ptr.vmem [resolvable:$true] %s20
      %26 = dma.hbm_to_vmem [thread:$0]  %s0, 256, %s21, [#allocation3], 128, 128, 8
    $region5: #{tpu_custom_call.1} parent=1 // pred_fallthru
      _
    // Predicated region
    $region6: #{tpu_custom_call.1} parent=1 // pred_check
      _
    $region7: #{tpu_custom_call.1} parent=1 // pred_check_branch
      %28 = sbr.rel (0) target = $region9
    $region8: #{tpu_custom_call.1} parent=1 // pred_region
      _
    $region9: #{tpu_custom_call.1} parent=1 // pred_fallthru
      _
    // Predicated region
    $region10: #{tpu_custom_call.1} parent=1 // pred_check
      _
    $region11: #{tpu_custom_call.1} parent=1 // pred_check_branch
      %30 = sbr.rel (0) target = $region13
    $region12: #{tpu_custom_call.1} parent=1 // pred_region
      _
    $region13: #{tpu_custom_call.1} parent=1 // pred_fallthru
      _
    // Predicated region
    $region14: #{tpu_custom_call.1} parent=1 // pred_check
      _
    $region15: #{tpu_custom_call.1} parent=1 // pred_check_branch
      %32 = sbr.rel (0) target = $region17
    $region16: #{tpu_custom_call.1} parent=1 // pred_region
      %s34 = ssub.s32 3072, 3072
      %35 = vsyncadd [#allocation6], %s34
      %s36 = sshll.u32 [#allocation5], 4
      %s37 = int_to_ptr.vmem [resolvable:$true] %s36
      %42 = dma.hbm_to_vmem [thread:$0]  %s3, 3072, %s37, [#allocation6], 192, 192, 12
    $region17: #{tpu_custom_call.1} parent=1 // pred_fallthru
      _
    // Predicated region
    $region18: #{tpu_custom_call.1} parent=1 // pred_check
      _
    $region19: #{tpu_custom_call.1} parent=1 // pred_check_branch
      %44 = sbr.rel (0) target = $region21
    $region20: #{tpu_custom_call.1} parent=1 // pred_region
      _
    $region21: #{tpu_custom_call.1} parent=1 // pred_fallthru
      _
    // Predicated region
    $region22: #{tpu_custom_call.1} parent=1 // pred_check
      _
    $region23: #{tpu_custom_call.1} parent=1 // pred_check_branch
      %46 = sbr.rel (0) target = $region25
    $region24: #{tpu_custom_call.1} parent=1 // pred_region
      %s48 = ssub.s32 1024, 1024
      %49 = vsyncadd [#allocation6], %s48
      %s50 = sshll.u32 [#allocation7], 4
      %s51 = int_to_ptr.vmem [resolvable:$true] %s50
      %56 = dma.hbm_to_vmem [thread:$0]  %s5, 1024, %s51, [#allocation6], 64, 64, 4
    $region25: #{tpu_custom_call.1} parent=1 // pred_fallthru
      _
    // Predicated region
    $region26: #{tpu_custom_call.1} parent=1 // pred_check
      _
    $region27: #{tpu_custom_call.1} parent=1 // pred_check_branch
      %58 = sbr.rel (0) target = $region29
    $region28: #{tpu_custom_call.1} parent=1 // pred_region
      _
    $region29: #{tpu_custom_call.1} parent=1 // pred_fallthru
      _
    // Predicated region
    $region30: #{tpu_custom_call.1} parent=1 // pred_check
      _
    $region31: #{tpu_custom_call.1} parent=1 // pred_check_branch
      %60 = sbr.rel (0) target = $region33
    $region32: #{tpu_custom_call.1} parent=1 // pred_region
      %61 = dma.done [#allocation3], 256
    $region33: #{tpu_custom_call.1} parent=1 // pred_fallthru
      _
    // Predicated region
    $region34: #{tpu_custom_call.1} parent=1 // pred_check
      _
    $region35: #{tpu_custom_call.1} parent=1 // pred_check_branch
      %63 = sbr.rel (0) target = $region37
    $region36: #{tpu_custom_call.1} parent=1 // pred_region
      %64 = dma.done [#allocation6], 3072
    $region37: #{tpu_custom_call.1} parent=1 // pred_fallthru
      _
    // Predicated region
    $region38: #{tpu_custom_call.1} parent=1 // pred_check
      _
    $region39: #{tpu_custom_call.1} parent=1 // pred_check_branch
      %66 = sbr.rel (0) target = $region41
    $region40: #{tpu_custom_call.1} parent=1 // pred_region
      %67 = dma.done [#allocation6], 1024
    $region41: #{tpu_custom_call.1} parent=1 // pred_fallthru
      _
    %v69 = vld [vmem:[#allocation2] sm:$0xff]
    %v70 = vld [vmem:[#allocation2 + $0x8] sm:$0xff]
    %71 = vadd.xlane.f32.xlu0 %v69
    %v72 = vpop.xlane.xlu0 %71
    %73 = vadd.xlane.f32.xlu0 %v70
    %v74 = vpop.xlane.xlu0 %73
    %v75 = vrcp.pop 128.0
    %v76 = vmul.f32 %v72, %v75
    %v77 = vmul.f32 %v74, %v75
    %v78 = vsub.f32 %v69, %v76
    %v79 = vsub.f32 %v70, %v77
    %v80 = vmul.f32 %v78, %v78
    %v81 = vmul.f32 %v79, %v79
    %82 = vadd.xlane.f32.xlu0 %v80
    %v83 = vpop.xlane.xlu0 %82
    %84 = vadd.xlane.f32.xlu0 %v81
    %v85 = vpop.xlane.xlu0 %84
    %v86 = vrcp.pop 127.0
    %v87 = vmul.f32 %v83, %v86
    %v88 = vmul.f32 %v85, %v86
    %v89 = vrsqrt.pop %v87
    %v90 = vmul.f32 %v87, %v89
    %vm91 = vcmp.eq.f32.partialorder %v87, inf
    %v92 = vsel %vm91, %v87, %v90
    %vm93 = vcmp.eq.f32.partialorder %v87, 0.0
    %v94 = vand.u32 %v87, 2147483648
    %v95 = vsel %vm93, %v94, %v92
    %v96 = vrsqrt.pop %v88
    %v97 = vmul.f32 %v88, %v96
    %vm98 = vcmp.eq.f32.partialorder %v88, inf
    %v99 = vsel %vm98, %v88, %v97
    %vm100 = vcmp.eq.f32.partialorder %v88, 0.0
    %v101 = vand.u32 %v88, 2147483648
    %v102 = vsel %vm100, %v101, %v99
    %v103 = vadd.f32 %v95, 1e-06
    %v104 = vadd.f32 %v102, 1e-06
    %v105 = vrcp.pop %v103
    %v106 = vmul.f32 1.0, %v105
    %v107 = vrcp.pop %v104
    %v108 = vmul.f32 1.0, %v107
    %v109 = vld [vmem:[%s1] sm:$0x1]
    %v110 = vmul.f32 %v78, %v106
    %v111 = vmul.f32 %v79, %v108
    %v113 = vlaneseq
    %v114 = vshrl.u32 %v113, 7
    %v115 = vsub.s32 0, %v114
    %v116 = vrot.slane %v109, %v115
    %v118 = vmul.f32 %v116, %v110
    %v119 = vmul.f32 %v116, %v111
    %v120 = vld [vmem:[%s2] sm:$0x1]
    %v122 = vlaneseq
    %v123 = vshrl.u32 %v122, 7
    %v124 = vsub.s32 0, %v123
    %v125 = vrot.slane %v120, %v124
    %v127 = vadd.f32 %v118, %v125
    %v128 = vadd.f32 %v119, %v125
    %v129 = vpack.c.bf16 %v128, %v127
    %v130 = vld [vmem:[#allocation5] sm:$0xff]
    %v131 = vld [vmem:[#allocation5 + $0x8] sm:$0xf]
    %v132 = vld [vmem:[#allocation5 + $0xc] sm:$0xff]
    %v133 = vld [vmem:[#allocation5 + $0x14] sm:$0xf]
    %v134 = vld [vmem:[#allocation5 + $0x18] sm:$0xff]
    %v135 = vld [vmem:[#allocation5 + $0x20] sm:$0xf]
    %v136 = vld [vmem:[#allocation5 + $0x24] sm:$0xff]
    %v137 = vld [vmem:[#allocation5 + $0x2c] sm:$0xf]
    %v138 = vld [vmem:[#allocation5 + $0x30] sm:$0xff]
    %v139 = vld [vmem:[#allocation5 + $0x38] sm:$0xf]
    %v140 = vld [vmem:[#allocation5 + $0x3c] sm:$0xff]
    %v141 = vld [vmem:[#allocation5 + $0x44] sm:$0xf]
    %v142 = vld [vmem:[#allocation5 + $0x48] sm:$0xff]
    %v143 = vld [vmem:[#allocation5 + $0x50] sm:$0xf]
    %v144 = vld [vmem:[#allocation5 + $0x54] sm:$0xff]
    %v145 = vld [vmem:[#allocation5 + $0x5c] sm:$0xf]
    %v146 = vld [vmem:[#allocation5 + $0x60] sm:$0xff]
    %v147 = vld [vmem:[#allocation5 + $0x68] sm:$0xf]
    %v148 = vld [vmem:[#allocation5 + $0x6c] sm:$0xff]
    %v149 = vld [vmem:[#allocation5 + $0x74] sm:$0xf]
    %v150 = vld [vmem:[#allocation5 + $0x78] sm:$0xff]
    %v151 = vld [vmem:[#allocation5 + $0x80] sm:$0xf]
    %v152 = vld [vmem:[#allocation5 + $0x84] sm:$0xff]
    %v153 = vld [vmem:[#allocation5 + $0x8c] sm:$0xf]
    %v154 = vld [vmem:[#allocation5 + $0x90] sm:$0xff]
    %v155 = vld [vmem:[#allocation5 + $0x98] sm:$0xf]
    %v156 = vld [vmem:[#allocation5 + $0x9c] sm:$0xff]
    %v157 = vld [vmem:[#allocation5 + $0xa4] sm:$0xf]
    %v158 = vld [vmem:[#allocation5 + $0xa8] sm:$0xff]
    %v159 = vld [vmem:[#allocation5 + $0xb0] sm:$0xf]
    %v160 = vld [vmem:[#allocation5 + $0xb4] sm:$0xff]
    %v161 = vld [vmem:[#allocation5 + $0xbc] sm:$0xf]
    %v162 = vld [vmem:[%s4] sm:$0x7]
    %v164 = vlaneseq
    %v165 = vshrl.u32 %v164, 7
    %v166 = vsub.s32 0, %v165
    %v167 = vrot.slane %v162, %v166
    %v168 = vlaneseq
    %v169 = vshrl.u32 %v168, 7
    %v170 = vsub.s32 1, %v169
    %v171 = vrot.slane %v162, %v170
    %v172 = vlaneseq
    %v173 = vshrl.u32 %v172, 7
    %v174 = vsub.s32 2, %v173
    %v175 = vrot.slane %v162, %v174
    %v211 = vunpack.c.l.b16 %v130
    %v212 = vunpack.c.h.b16 %v130
    %v213 = vunpack.c.l.b16 %v131
    %v214 = vunpack.c.l.b16 %v132
    %v215 = vunpack.c.h.b16 %v132
    %v216 = vunpack.c.l.b16 %v133
    %v217 = vunpack.c.l.b16 %v134
    %v218 = vunpack.c.h.b16 %v134
    %v219 = vunpack.c.l.b16 %v135
    %v220 = vunpack.c.l.b16 %v136
    %v221 = vunpack.c.h.b16 %v136
    %v222 = vunpack.c.l.b16 %v137
    %v223 = vunpack.c.l.b16 %v138
    %v224 = vunpack.c.h.b16 %v138
    %v225 = vunpack.c.l.b16 %v139
    %v226 = vunpack.c.l.b16 %v140
    %v227 = vunpack.c.h.b16 %v140
    %v228 = vunpack.c.l.b16 %v141
    %v229 = vunpack.c.l.b16 %v142
    %v230 = vunpack.c.h.b16 %v142
    %v231 = vunpack.c.l.b16 %v143
    %v232 = vunpack.c.l.b16 %v144
    %v233 = vunpack.c.h.b16 %v144
    %v234 = vunpack.c.l.b16 %v145
    %v235 = vunpack.c.l.b16 %v146
    %v236 = vunpack.c.h.b16 %v146
    %v237 = vunpack.c.l.b16 %v147
    %v238 = vunpack.c.l.b16 %v148
    %v239 = vunpack.c.h.b16 %v148
    %v240 = vunpack.c.l.b16 %v149
    %v241 = vunpack.c.l.b16 %v150
    %v242 = vunpack.c.h.b16 %v150
    %v243 = vunpack.c.l.b16 %v151
    %v244 = vunpack.c.l.b16 %v152
    %v245 = vunpack.c.h.b16 %v152
    %v246 = vunpack.c.l.b16 %v153
    %v247 = vunpack.c.l.b16 %v154
    %v248 = vunpack.c.h.b16 %v154
    %v249 = vunpack.c.l.b16 %v155
    %v250 = vunpack.c.l.b16 %v156
    %v251 = vunpack.c.h.b16 %v156
    %v252 = vunpack.c.l.b16 %v157
    %v253 = vunpack.c.l.b16 %v158
    %v254 = vunpack.c.h.b16 %v158
    %v255 = vunpack.c.l.b16 %v159
    %v256 = vunpack.c.l.b16 %v160
    %v257 = vunpack.c.h.b16 %v160
    %v258 = vunpack.c.l.b16 %v161
    %v259 = vpack.c.b16 %v214, %v211
    %v260 = vpack.c.b16 %v215, %v212
    %v261 = vpack.c.b16 %v216, %v213
    %v262 = vpack.c.b16 %v220, %v217
    %v263 = vpack.c.b16 %v221, %v218
    %v264 = vpack.c.b16 %v222, %v219
    %v265 = vpack.c.b16 %v226, %v223
    %v266 = vpack.c.b16 %v227, %v224
    %v267 = vpack.c.b16 %v228, %v225
    %v268 = vpack.c.b16 %v232, %v229
    %v269 = vpack.c.b16 %v233, %v230
    %v270 = vpack.c.b16 %v234, %v231
    %v271 = vpack.c.b16 %v238, %v235
    %v272 = vpack.c.b16 %v239, %v236
    %v273 = vpack.c.b16 %v240, %v237
    %v274 = vpack.c.b16 %v244, %v241
    %v275 = vpack.c.b16 %v245, %v242
    %v276 = vpack.c.b16 %v246, %v243
    %v277 = vpack.c.b16 %v250, %v247
    %v278 = vpack.c.b16 %v251, %v248
    %v279 = vpack.c.b16 %v252, %v249
    %v280 = vpack.c.b16 %v256, %v253
    %v281 = vpack.c.b16 %v257, %v254
    %v282 = vpack.c.b16 %v258, %v255
    %307 = vmatprep.subr.bf16.mxu0 %v260
    %308 = vmatpush1.bf16.msra.mxu0 %v259
    %309 = vmatprep.subr.bf16.mxu0 %v263
    %310 = vmatpush1.bf16.msra.mxu0 %v262
    %311 = vmatprep.subr.bf16.mxu0 %v266
    %312 = vmatpush1.bf16.msra.mxu0 %v265
    %313 = vmatprep.subr.bf16.mxu0 %v269
    %314 = vmatpush1.bf16.msra.mxu0 %v268
    %315 = vmatprep.subr.bf16.mxu0 %v272
    %316 = vmatpush1.bf16.msra.mxu0 %v271
    %317 = vmatprep.subr.bf16.mxu0 %v275
    %318 = vmatpush1.bf16.msra.mxu0 %v274
    %319 = vmatprep.subr.bf16.mxu0 %v278
    %320 = vmatpush1.bf16.msra.mxu0 %v277
    %321 = vmatprep.subr.bf16.mxu0 %v281
    %322 = vmatpush1.bf16.msra.mxu0 %v280
    %323 = vmatprep.subr.bf16.mxu0 0
    %324 = vmatpush1.bf16.msra.mxu0 0
    %325 = vmatprep.subr.bf16.mxu0 0
    %326 = vmatpush1.bf16.msra.mxu0 0
    %327 = vmatprep.subr.bf16.mxu0 0
    %328 = vmatpush1.bf16.msra.mxu0 0
    %329 = vmatprep.subr.bf16.mxu0 0
    %330 = vmatpush1.bf16.msra.mxu0 0
    %331 = vmatprep.subr.bf16.mxu0 0
    %332 = vmatpush1.bf16.msra.mxu0 0
    %333 = vmatprep.subr.bf16.mxu0 0
    %334 = vmatpush1.bf16.msra.mxu0 0
    %335 = vmatprep.subr.bf16.mxu0 0
    %336 = vmatpush1.bf16.msra.mxu0 0
    %337 = vmatprep.subr.bf16.mxu0 0
    %338 = vmatpush1.bf16.msra.mxu0 0
    %339 = vmatprep.mubr.bf16.mxu0 0
    %340 = vmatmul.mubr.bf16.gmra.mrb[0].mxu0 %v129
    %v341 = vpop.f32.mrb[0].mxu0
    %v342 = vadd.f32 %v167, %v341
    %v343 = vpop.f32.mrb[0].mxu0
    %v344 = vadd.f32 %v171, %v343
    %v345 = vpop.f32.mrb[0].mxu0
    %v346 = vadd.f32 %v167, %v345
    %v347 = vpop.f32.mrb[0].mxu0
    %v348 = vadd.f32 %v171, %v347
    %349 = vdwg.mxu0
    %350 = vmatprep.subr.bf16.mxu0 0
    %351 = vmatpush1.bf16.msra.mxu0 %v261
    %352 = vmatprep.subr.bf16.mxu0 0
    %353 = vmatpush1.bf16.msra.mxu0 %v264
    %354 = vmatprep.subr.bf16.mxu0 0
    %355 = vmatpush1.bf16.msra.mxu0 %v267
    %356 = vmatprep.subr.bf16.mxu0 0
    %357 = vmatpush1.bf16.msra.mxu0 %v270
    %358 = vmatprep.subr.bf16.mxu0 0
    %359 = vmatpush1.bf16.msra.mxu0 %v273
    %360 = vmatprep.subr.bf16.mxu0 0
    %361 = vmatpush1.bf16.msra.mxu0 %v276
    %362 = vmatprep.subr.bf16.mxu0 0
    %363 = vmatpush1.bf16.msra.mxu0 %v279
    %364 = vmatprep.subr.bf16.mxu0 0
    %365 = vmatpush1.bf16.msra.mxu0 %v282
    %366 = vmatprep.subr.bf16.mxu0 0
    %367 = vmatpush1.bf16.msra.mxu0 0
    %368 = vmatprep.subr.bf16.mxu0 0
    %369 = vmatpush1.bf16.msra.mxu0 0
    %370 = vmatprep.subr.bf16.mxu0 0
    %371 = vmatpush1.bf16.msra.mxu0 0
    %372 = vmatprep.subr.bf16.mxu0 0
    %373 = vmatpush1.bf16.msra.mxu0 0
    %374 = vmatprep.subr.bf16.mxu0 0
    %375 = vmatpush1.bf16.msra.mxu0 0
    %376 = vmatprep.subr.bf16.mxu0 0
    %377 = vmatpush1.bf16.msra.mxu0 0
    %378 = vmatprep.subr.bf16.mxu0 0
    %379 = vmatpush1.bf16.msra.mxu0 0
    %380 = vmatprep.subr.bf16.mxu0 0
    %381 = vmatpush1.bf16.msra.mxu0 0
    %382 = vmatprep.mubr.bf16.mxu0 0
    %383 = vmatmul.mubr.bf16.gmra.mrb[0].mxu0 %v129
    %v384 = vpop.f32.mrb[0].mxu0
    %v385 = vadd.f32 %v175, %v384
    %v386 = vpop.f32.mrb[0].mxu0
    %v387 = vpop.f32.mrb[0].mxu0
    %v388 = vadd.f32 %v175, %v387
    %v389 = vpop.f32.mrb[0].mxu0
    %390 = vdwg.mxu0
    %393 = vrot.lane.b32.xlu0 %v342, 96
    %v394 = vpop.permute.xlu0 %393
    %395 = vrot.lane.b32.xlu0 %v346, 96
    %v396 = vpop.permute.xlu0 %395
    %399 = vrot.lane.b32.xlu0 %v342, 64
    %v400 = vpop.permute.xlu0 %399
    %401 = vrot.lane.b32.xlu0 %v346, 64
    %v402 = vpop.permute.xlu0 %401
    %405 = vrot.lane.b32.xlu0 %v342, 32
    %v406 = vpop.permute.xlu0 %405
    %407 = vrot.lane.b32.xlu0 %v346, 32
    %v408 = vpop.permute.xlu0 %407
    %v411 = vcombine.low %v342, %v400
    %v412 = vcombine.high %v342, %v400
    %v414 = vunpack.c.l.s4 1983009808
    %v415 = vunpack.c.0.s8 %v414
    %v416 = vlaneseq
    %v417 = vshrl.u32 %v416, 7
    %v418 = vsub.s32 %v415, %v417
    %v419 = vrot.slane %v411, %v418
    %v421 = vunpack.c.l.s4 1983009808
    %v422 = vunpack.c.0.s8 %v421
    %v423 = vlaneseq
    %v424 = vshrl.u32 %v423, 7
    %v425 = vsub.s32 %v422, %v424
    %v426 = vrot.slane %v412, %v425
    %v427 = vcombine.low %v394, %v406
    %v428 = vcombine.high %v394, %v406
    %v430 = vunpack.c.l.s4 1983009808
    %v431 = vunpack.c.0.s8 %v430
    %v432 = vlaneseq
    %v433 = vshrl.u32 %v432, 7
    %v434 = vsub.s32 %v431, %v433
    %v435 = vrot.slane %v427, %v434
    %v437 = vunpack.c.l.s4 1983009808
    %v438 = vunpack.c.0.s8 %v437
    %v439 = vlaneseq
    %v440 = vshrl.u32 %v439, 7
    %v441 = vsub.s32 %v438, %v440
    %v442 = vrot.slane %v428, %v441
    %v443 = vcombine.low %v419, %v435
    %v444 = vcombine.high %v419, %v435
    %v446 = vunpack.c.l.s4 1934713408
    %v447 = vunpack.c.0.s8 %v446
    %v448 = vlaneseq
    %v449 = vshrl.u32 %v448, 7
    %v450 = vsub.s32 %v447, %v449
    %v451 = vrot.slane %v443, %v450
    %v453 = vunpack.c.l.s4 1934713408
    %v454 = vunpack.c.0.s8 %v453
    %v455 = vlaneseq
    %v456 = vshrl.u32 %v455, 7
    %v457 = vsub.s32 %v454, %v456
    %v458 = vrot.slane %v444, %v457
    %v459 = vcombine.low %v426, %v442
    %v460 = vcombine.high %v426, %v442
    %v462 = vunpack.c.l.s4 1934713408
    %v463 = vunpack.c.0.s8 %v462
    %v464 = vlaneseq
    %v465 = vshrl.u32 %v464, 7
    %v466 = vsub.s32 %v463, %v465
    %v467 = vrot.slane %v459, %v466
    %v469 = vunpack.c.l.s4 1934713408
    %v470 = vunpack.c.0.s8 %v469
    %v471 = vlaneseq
    %v472 = vshrl.u32 %v471, 7
    %v473 = vsub.s32 %v470, %v472
    %v474 = vrot.slane %v460, %v473
    %v475 = vcombine.high %v451, 0.0
    %v476 = vcombine.high %v458, 0.0
    %v477 = vcombine.high %v467, 0.0
    %v478 = vcombine.high %v474, 0.0
    %v479 = vcombine.low %v346, %v402
    %v480 = vcombine.high %v346, %v402
    %v482 = vunpack.c.l.s4 1983009808
    %v483 = vunpack.c.0.s8 %v482
    %v484 = vlaneseq
    %v485 = vshrl.u32 %v484, 7
    %v486 = vsub.s32 %v483, %v485
    %v487 = vrot.slane %v479, %v486
    %v489 = vunpack.c.l.s4 1983009808
    %v490 = vunpack.c.0.s8 %v489
    %v491 = vlaneseq
    %v492 = vshrl.u32 %v491, 7
    %v493 = vsub.s32 %v490, %v492
    %v494 = vrot.slane %v480, %v493
    %v495 = vcombine.low %v396, %v408
    %v496 = vcombine.high %v396, %v408
    %v498 = vunpack.c.l.s4 1983009808
    %v499 = vunpack.c.0.s8 %v498
    %v500 = vlaneseq
    %v501 = vshrl.u32 %v500, 7
    %v502 = vsub.s32 %v499, %v501
    %v503 = vrot.slane %v495, %v502
    %v505 = vunpack.c.l.s4 1983009808
    %v506 = vunpack.c.0.s8 %v505
    %v507 = vlaneseq
    %v508 = vshrl.u32 %v507, 7
    %v509 = vsub.s32 %v506, %v508
    %v510 = vrot.slane %v496, %v509
    %v511 = vcombine.low %v487, %v503
    %v512 = vcombine.high %v487, %v503
    %v514 = vunpack.c.l.s4 1934713408
    %v515 = vunpack.c.0.s8 %v514
    %v516 = vlaneseq
    %v517 = vshrl.u32 %v516, 7
    %v518 = vsub.s32 %v515, %v517
    %v519 = vrot.slane %v511, %v518
    %v521 = vunpack.c.l.s4 1934713408
    %v522 = vunpack.c.0.s8 %v521
    %v523 = vlaneseq
    %v524 = vshrl.u32 %v523, 7
    %v525 = vsub.s32 %v522, %v524
    %v526 = vrot.slane %v512, %v525
    %v527 = vcombine.low %v494, %v510
    %v528 = vcombine.high %v494, %v510
    %v530 = vunpack.c.l.s4 1934713408
    %v531 = vunpack.c.0.s8 %v530
    %v532 = vlaneseq
    %v533 = vshrl.u32 %v532, 7
    %v534 = vsub.s32 %v531, %v533
    %v535 = vrot.slane %v527, %v534
    %v537 = vunpack.c.l.s4 1934713408
    %v538 = vunpack.c.0.s8 %v537
    %v539 = vlaneseq
    %v540 = vshrl.u32 %v539, 7
    %v541 = vsub.s32 %v538, %v540
    %v542 = vrot.slane %v528, %v541
    %v543 = vcombine.high %v519, 0.0
    %v544 = vcombine.high %v526, 0.0
    %v545 = vcombine.high %v535, 0.0
    %v546 = vcombine.high %v542, 0.0
    %v547 = vcombine.low %v451, %v458
    %v549 = vunpack.c.l.s4 1983009808
    %v550 = vunpack.c.0.s8 %v549
    %v551 = vlaneseq
    %v552 = vshrl.u32 %v551, 7
    %v553 = vsub.s32 %v550, %v552
    %v554 = vrot.slane %v547, %v553
    %v555 = vcombine.low %v475, %v476
    %v557 = vunpack.c.l.s4 1983009808
    %v558 = vunpack.c.0.s8 %v557
    %v559 = vlaneseq
    %v560 = vshrl.u32 %v559, 7
    %v561 = vsub.s32 %v558, %v560
    %v562 = vrot.slane %v555, %v561
    %v563 = vcombine.low %v467, %v474
    %v565 = vunpack.c.l.s4 1983009808
    %v566 = vunpack.c.0.s8 %v565
    %v567 = vlaneseq
    %v568 = vshrl.u32 %v567, 7
    %v569 = vsub.s32 %v566, %v568
    %v570 = vrot.slane %v563, %v569
    %v571 = vcombine.low %v477, %v478
    %v573 = vunpack.c.l.s4 1983009808
    %v574 = vunpack.c.0.s8 %v573
    %v575 = vlaneseq
    %v576 = vshrl.u32 %v575, 7
    %v577 = vsub.s32 %v574, %v576
    %v578 = vrot.slane %v571, %v577
    %v579 = vcombine.low %v554, %v562
    %v580 = vcombine.high %v554, %v562
    %v582 = vunpack.c.l.s4 1934713408
    %v583 = vunpack.c.0.s8 %v582
    %v584 = vlaneseq
    %v585 = vshrl.u32 %v584, 7
    %v586 = vsub.s32 %v583, %v585
    %v587 = vrot.slane %v579, %v586
    %v589 = vunpack.c.l.s4 1934713408
    %v590 = vunpack.c.0.s8 %v589
    %v591 = vlaneseq
    %v592 = vshrl.u32 %v591, 7
    %v593 = vsub.s32 %v590, %v592
    %v594 = vrot.slane %v580, %v593
    %v595 = vcombine.low %v570, %v578
    %v596 = vcombine.high %v570, %v578
    %v598 = vunpack.c.l.s4 1934713408
    %v599 = vunpack.c.0.s8 %v598
    %v600 = vlaneseq
    %v601 = vshrl.u32 %v600, 7
    %v602 = vsub.s32 %v599, %v601
    %v603 = vrot.slane %v595, %v602
    %v605 = vunpack.c.l.s4 1934713408
    %v606 = vunpack.c.0.s8 %v605
    %v607 = vlaneseq
    %v608 = vshrl.u32 %v607, 7
    %v609 = vsub.s32 %v606, %v608
    %v610 = vrot.slane %v596, %v609
    %v611 = vcombine.low %v587, %v603
    %v612 = vcombine.high %v587, %v603
    %v613 = vcombine.low %v594, %v610
    %v614 = vcombine.high %v594, %v610
    %v615 = vcombine.low %v519, %v526
    %v617 = vunpack.c.l.s4 1983009808
    %v618 = vunpack.c.0.s8 %v617
    %v619 = vlaneseq
    %v620 = vshrl.u32 %v619, 7
    %v621 = vsub.s32 %v618, %v620
    %v622 = vrot.slane %v615, %v621
    %v623 = vcombine.low %v543, %v544
    %v625 = vunpack.c.l.s4 1983009808
    %v626 = vunpack.c.0.s8 %v625
    %v627 = vlaneseq
    %v628 = vshrl.u32 %v627, 7
    %v629 = vsub.s32 %v626, %v628
    %v630 = vrot.slane %v623, %v629
    %v631 = vcombine.low %v535, %v542
    %v633 = vunpack.c.l.s4 1983009808
    %v634 = vunpack.c.0.s8 %v633
    %v635 = vlaneseq
    %v636 = vshrl.u32 %v635, 7
    %v637 = vsub.s32 %v634, %v636
    %v638 = vrot.slane %v631, %v637
    %v639 = vcombine.low %v545, %v546
    %v641 = vunpack.c.l.s4 1983009808
    %v642 = vunpack.c.0.s8 %v641
    %v643 = vlaneseq
    %v644 = vshrl.u32 %v643, 7
    %v645 = vsub.s32 %v642, %v644
    %v646 = vrot.slane %v639, %v645
    %v647 = vcombine.low %v622, %v630
    %v648 = vcombine.high %v622, %v630
    %v650 = vunpack.c.l.s4 1934713408
    %v651 = vunpack.c.0.s8 %v650
    %v652 = vlaneseq
    %v653 = vshrl.u32 %v652, 7
    %v654 = vsub.s32 %v651, %v653
    %v655 = vrot.slane %v647, %v654
    %v657 = vunpack.c.l.s4 1934713408
    %v658 = vunpack.c.0.s8 %v657
    %v659 = vlaneseq
    %v660 = vshrl.u32 %v659, 7
    %v661 = vsub.s32 %v658, %v660
    %v662 = vrot.slane %v648, %v661
    %v663 = vcombine.low %v638, %v646
    %v664 = vcombine.high %v638, %v646
    %v666 = vunpack.c.l.s4 1934713408
    %v667 = vunpack.c.0.s8 %v666
    %v668 = vlaneseq
    %v669 = vshrl.u32 %v668, 7
    %v670 = vsub.s32 %v667, %v669
    %v671 = vrot.slane %v663, %v670
    %v673 = vunpack.c.l.s4 1934713408
    %v674 = vunpack.c.0.s8 %v673
    %v675 = vlaneseq
    %v676 = vshrl.u32 %v675, 7
    %v677 = vsub.s32 %v674, %v676
    %v678 = vrot.slane %v664, %v677
    %v679 = vcombine.low %v655, %v671
    %v680 = vcombine.high %v655, %v671
    %v681 = vcombine.low %v662, %v678
    %v682 = vcombine.high %v662, %v678
    %v683 = vmul.f32 %v611, 0.17677669
    %v684 = vmul.f32 %v612, 0.17677669
    %v685 = vmul.f32 %v613, 0.17677669
    %v686 = vmul.f32 %v614, 0.17677669
    %v687 = vmul.f32 %v679, 0.17677669
    %v688 = vmul.f32 %v680, 0.17677669
    %v689 = vmul.f32 %v681, 0.17677669
    %v690 = vmul.f32 %v682, 0.17677669
    %693 = vrot.lane.b32.xlu0 %v344, 96
    %v694 = vpop.permute.xlu0 %693
    %695 = vrot.lane.b32.xlu0 %v348, 96
    %v696 = vpop.permute.xlu0 %695
    %699 = vrot.lane.b32.xlu0 %v344, 64
    %v700 = vpop.permute.xlu0 %699
    %701 = vrot.lane.b32.xlu0 %v348, 64
    %v702 = vpop.permute.xlu0 %701
    %705 = vrot.lane.b32.xlu0 %v344, 32
    %v706 = vpop.permute.xlu0 %705
    %707 = vrot.lane.b32.xlu0 %v348, 32
    %v708 = vpop.permute.xlu0 %707
    %v711 = vcombine.low %v344, %v700
    %v712 = vcombine.high %v344, %v700
    %v714 = vunpack.c.l.s4 1983009808
    %v715 = vunpack.c.0.s8 %v714
    %v716 = vlaneseq
    %v717 = vshrl.u32 %v716, 7
    %v718 = vsub.s32 %v715, %v717
    %v719 = vrot.slane %v711, %v718
    %v721 = vunpack.c.l.s4 1983009808
    %v722 = vunpack.c.0.s8 %v721
    %v723 = vlaneseq
    %v724 = vshrl.u32 %v723, 7
    %v725 = vsub.s32 %v722, %v724
    %v726 = vrot.slane %v712, %v725
    %v727 = vcombine.low %v694, %v706
    %v728 = vcombine.high %v694, %v706
    %v730 = vunpack.c.l.s4 1983009808
    %v731 = vunpack.c.0.s8 %v730
    %v732 = vlaneseq
    %v733 = vshrl.u32 %v732, 7
    %v734 = vsub.s32 %v731, %v733
    %v735 = vrot.slane %v727, %v734
    %v737 = vunpack.c.l.s4 1983009808
    %v738 = vunpack.c.0.s8 %v737
    %v739 = vlaneseq
    %v740 = vshrl.u32 %v739, 7
    %v741 = vsub.s32 %v738, %v740
    %v742 = vrot.slane %v728, %v741
    %v743 = vcombine.low %v719, %v735
    %v744 = vcombine.high %v719, %v735
    %v746 = vunpack.c.l.s4 1934713408
    %v747 = vunpack.c.0.s8 %v746
    %v748 = vlaneseq
    %v749 = vshrl.u32 %v748, 7
    %v750 = vsub.s32 %v747, %v749
    %v751 = vrot.slane %v743, %v750
    %v753 = vunpack.c.l.s4 1934713408
    %v754 = vunpack.c.0.s8 %v753
    %v755 = vlaneseq
    %v756 = vshrl.u32 %v755, 7
    %v757 = vsub.s32 %v754, %v756
    %v758 = vrot.slane %v744, %v757
    %v759 = vcombine.low %v726, %v742
    %v760 = vcombine.high %v726, %v742
    %v762 = vunpack.c.l.s4 1934713408
    %v763 = vunpack.c.0.s8 %v762
    %v764 = vlaneseq
    %v765 = vshrl.u32 %v764, 7
    %v766 = vsub.s32 %v763, %v765
    %v767 = vrot.slane %v759, %v766
    %v769 = vunpack.c.l.s4 1934713408
    %v770 = vunpack.c.0.s8 %v769
    %v771 = vlaneseq
    %v772 = vshrl.u32 %v771, 7
    %v773 = vsub.s32 %v770, %v772
    %v774 = vrot.slane %v760, %v773
    %v775 = vcombine.high %v751, 0.0
    %v776 = vcombine.high %v758, 0.0
    %v777 = vcombine.high %v767, 0.0
    %v778 = vcombine.high %v774, 0.0
    %v779 = vcombine.low %v348, %v702
    %v780 = vcombine.high %v348, %v702
    %v782 = vunpack.c.l.s4 1983009808
    %v783 = vunpack.c.0.s8 %v782
    %v784 = vlaneseq
    %v785 = vshrl.u32 %v784, 7
    %v786 = vsub.s32 %v783, %v785
    %v787 = vrot.slane %v779, %v786
    %v789 = vunpack.c.l.s4 1983009808
    %v790 = vunpack.c.0.s8 %v789
    %v791 = vlaneseq
    %v792 = vshrl.u32 %v791, 7
    %v793 = vsub.s32 %v790, %v792
    %v794 = vrot.slane %v780, %v793
    %v795 = vcombine.low %v696, %v708
    %v796 = vcombine.high %v696, %v708
    %v798 = vunpack.c.l.s4 1983009808
    %v799 = vunpack.c.0.s8 %v798
    %v800 = vlaneseq
    %v801 = vshrl.u32 %v800, 7
    %v802 = vsub.s32 %v799, %v801
    %v803 = vrot.slane %v795, %v802
    %v805 = vunpack.c.l.s4 1983009808
    %v806 = vunpack.c.0.s8 %v805
    %v807 = vlaneseq
    %v808 = vshrl.u32 %v807, 7
    %v809 = vsub.s32 %v806, %v808
    %v810 = vrot.slane %v796, %v809
    %v811 = vcombine.low %v787, %v803
    %v812 = vcombine.high %v787, %v803
    %v814 = vunpack.c.l.s4 1934713408
    %v815 = vunpack.c.0.s8 %v814
    %v816 = vlaneseq
    %v817 = vshrl.u32 %v816, 7
    %v818 = vsub.s32 %v815, %v817
    %v819 = vrot.slane %v811, %v818
    %v821 = vunpack.c.l.s4 1934713408
    %v822 = vunpack.c.0.s8 %v821
    %v823 = vlaneseq
    %v824 = vshrl.u32 %v823, 7
    %v825 = vsub.s32 %v822, %v824
    %v826 = vrot.slane %v812, %v825
    %v827 = vcombine.low %v794, %v810
    %v828 = vcombine.high %v794, %v810
    %v830 = vunpack.c.l.s4 1934713408
    %v831 = vunpack.c.0.s8 %v830
    %v832 = vlaneseq
    %v833 = vshrl.u32 %v832, 7
    %v834 = vsub.s32 %v831, %v833
    %v835 = vrot.slane %v827, %v834
    %v837 = vunpack.c.l.s4 1934713408
    %v838 = vunpack.c.0.s8 %v837
    %v839 = vlaneseq
    %v840 = vshrl.u32 %v839, 7
    %v841 = vsub.s32 %v838, %v840
    %v842 = vrot.slane %v828, %v841
    %v843 = vcombine.high %v819, 0.0
    %v844 = vcombine.high %v826, 0.0
    %v845 = vcombine.high %v835, 0.0
    %v846 = vcombine.high %v842, 0.0
    %v847 = vcombine.low %v751, %v758
    %v849 = vunpack.c.l.s4 1983009808
    %v850 = vunpack.c.0.s8 %v849
    %v851 = vlaneseq
    %v852 = vshrl.u32 %v851, 7
    %v853 = vsub.s32 %v850, %v852
    %v854 = vrot.slane %v847, %v853
    %v855 = vcombine.low %v775, %v776
    %v857 = vunpack.c.l.s4 1983009808
    %v858 = vunpack.c.0.s8 %v857
    %v859 = vlaneseq
    %v860 = vshrl.u32 %v859, 7
    %v861 = vsub.s32 %v858, %v860
    %v862 = vrot.slane %v855, %v861
    %v863 = vcombine.low %v767, %v774
    %v865 = vunpack.c.l.s4 1983009808
    %v866 = vunpack.c.0.s8 %v865
    %v867 = vlaneseq
    %v868 = vshrl.u32 %v867, 7
    %v869 = vsub.s32 %v866, %v868
    %v870 = vrot.slane %v863, %v869
    %v871 = vcombine.low %v777, %v778
    %v873 = vunpack.c.l.s4 1983009808
    %v874 = vunpack.c.0.s8 %v873
    %v875 = vlaneseq
    %v876 = vshrl.u32 %v875, 7
    %v877 = vsub.s32 %v874, %v876
    %v878 = vrot.slane %v871, %v877
    %v879 = vcombine.low %v854, %v862
    %v880 = vcombine.high %v854, %v862
    %v882 = vunpack.c.l.s4 1934713408
    %v883 = vunpack.c.0.s8 %v882
    %v884 = vlaneseq
    %v885 = vshrl.u32 %v884, 7
    %v886 = vsub.s32 %v883, %v885
    %v887 = vrot.slane %v879, %v886
    %v889 = vunpack.c.l.s4 1934713408
    %v890 = vunpack.c.0.s8 %v889
    %v891 = vlaneseq
    %v892 = vshrl.u32 %v891, 7
    %v893 = vsub.s32 %v890, %v892
    %v894 = vrot.slane %v880, %v893
    %v895 = vcombine.low %v870, %v878
    %v896 = vcombine.high %v870, %v878
    %v898 = vunpack.c.l.s4 1934713408
    %v899 = vunpack.c.0.s8 %v898
    %v900 = vlaneseq
    %v901 = vshrl.u32 %v900, 7
    %v902 = vsub.s32 %v899, %v901
    %v903 = vrot.slane %v895, %v902
    %v905 = vunpack.c.l.s4 1934713408
    %v906 = vunpack.c.0.s8 %v905
    %v907 = vlaneseq
    %v908 = vshrl.u32 %v907, 7
    %v909 = vsub.s32 %v906, %v908
    %v910 = vrot.slane %v896, %v909
    %v911 = vcombine.low %v887, %v903
    %v912 = vcombine.high %v887, %v903
    %v913 = vcombine.low %v894, %v910
    %v914 = vcombine.high %v894, %v910
    %v915 = vcombine.low %v819, %v826
    %v917 = vunpack.c.l.s4 1983009808
    %v918 = vunpack.c.0.s8 %v917
    %v919 = vlaneseq
    %v920 = vshrl.u32 %v919, 7
    %v921 = vsub.s32 %v918, %v920
    %v922 = vrot.slane %v915, %v921
    %v923 = vcombine.low %v843, %v844
    %v925 = vunpack.c.l.s4 1983009808
    %v926 = vunpack.c.0.s8 %v925
    %v927 = vlaneseq
    %v928 = vshrl.u32 %v927, 7
    %v929 = vsub.s32 %v926, %v928
    %v930 = vrot.slane %v923, %v929
    %v931 = vcombine.low %v835, %v842
    %v933 = vunpack.c.l.s4 1983009808
    %v934 = vunpack.c.0.s8 %v933
    %v935 = vlaneseq
    %v936 = vshrl.u32 %v935, 7
    %v937 = vsub.s32 %v934, %v936
    %v938 = vrot.slane %v931, %v937
    %v939 = vcombine.low %v845, %v846
    %v941 = vunpack.c.l.s4 1983009808
    %v942 = vunpack.c.0.s8 %v941
    %v943 = vlaneseq
    %v944 = vshrl.u32 %v943, 7
    %v945 = vsub.s32 %v942, %v944
    %v946 = vrot.slane %v939, %v945
    %v947 = vcombine.low %v922, %v930
    %v948 = vcombine.high %v922, %v930
    %v950 = vunpack.c.l.s4 1934713408
    %v951 = vunpack.c.0.s8 %v950
    %v952 = vlaneseq
    %v953 = vshrl.u32 %v952, 7
    %v954 = vsub.s32 %v951, %v953
    %v955 = vrot.slane %v947, %v954
    %v957 = vunpack.c.l.s4 1934713408
    %v958 = vunpack.c.0.s8 %v957
    %v959 = vlaneseq
    %v960 = vshrl.u32 %v959, 7
    %v961 = vsub.s32 %v958, %v960
    %v962 = vrot.slane %v948, %v961
    %v963 = vcombine.low %v938, %v946
    %v964 = vcombine.high %v938, %v946
    %v966 = vunpack.c.l.s4 1934713408
    %v967 = vunpack.c.0.s8 %v966
    %v968 = vlaneseq
    %v969 = vshrl.u32 %v968, 7
    %v970 = vsub.s32 %v967, %v969
    %v971 = vrot.slane %v963, %v970
    %v973 = vunpack.c.l.s4 1934713408
    %v974 = vunpack.c.0.s8 %v973
    %v975 = vlaneseq
    %v976 = vshrl.u32 %v975, 7
    %v977 = vsub.s32 %v974, %v976
    %v978 = vrot.slane %v964, %v977
    %v979 = vcombine.low %v955, %v971
    %v980 = vcombine.high %v955, %v971
    %v981 = vcombine.low %v962, %v978
    %v982 = vcombine.high %v962, %v978
    %985 = vrot.lane.b32.xlu0 %v385, 96
    %v986 = vpop.permute.xlu0 %985
    %987 = vrot.lane.b32.xlu0 %v388, 96
    %v988 = vpop.permute.xlu0 %987
    %991 = vrot.lane.b32.xlu0 %v385, 64
    %v992 = vpop.permute.xlu0 %991
    %993 = vrot.lane.b32.xlu0 %v388, 64
    %v994 = vpop.permute.xlu0 %993
    %997 = vrot.lane.b32.xlu0 %v385, 32
    %v998 = vpop.permute.xlu0 %997
    %999 = vrot.lane.b32.xlu0 %v388, 32
    %v1000 = vpop.permute.xlu0 %999
    %v1003 = vcombine.low %v385, %v992
    %v1004 = vcombine.high %v385, %v992
    %v1006 = vunpack.c.l.s4 1983009808
    %v1007 = vunpack.c.0.s8 %v1006
    %v1008 = vlaneseq
    %v1009 = vshrl.u32 %v1008, 7
    %v1010 = vsub.s32 %v1007, %v1009
    %v1011 = vrot.slane %v1003, %v1010
    %v1013 = vunpack.c.l.s4 1983009808
    %v1014 = vunpack.c.0.s8 %v1013
    %v1015 = vlaneseq
    %v1016 = vshrl.u32 %v1015, 7
    %v1017 = vsub.s32 %v1014, %v1016
    %v1018 = vrot.slane %v1004, %v1017
    %v1019 = vcombine.low %v986, %v998
    %v1020 = vcombine.high %v986, %v998
    %v1022 = vunpack.c.l.s4 1983009808
    %v1023 = vunpack.c.0.s8 %v1022
    %v1024 = vlaneseq
    %v1025 = vshrl.u32 %v1024, 7
    %v1026 = vsub.s32 %v1023, %v1025
    %v1027 = vrot.slane %v1019, %v1026
    %v1029 = vunpack.c.l.s4 1983009808
    %v1030 = vunpack.c.0.s8 %v1029
    %v1031 = vlaneseq
    %v1032 = vshrl.u32 %v1031, 7
    %v1033 = vsub.s32 %v1030, %v1032
    %v1034 = vrot.slane %v1020, %v1033
    %v1035 = vcombine.low %v1011, %v1027
    %v1036 = vcombine.high %v1011, %v1027
    %v1038 = vunpack.c.l.s4 1934713408
    %v1039 = vunpack.c.0.s8 %v1038
    %v1040 = vlaneseq
    %v1041 = vshrl.u32 %v1040, 7
    %v1042 = vsub.s32 %v1039, %v1041
    %v1043 = vrot.slane %v1035, %v1042
    %v1045 = vunpack.c.l.s4 1934713408
    %v1046 = vunpack.c.0.s8 %v1045
    %v1047 = vlaneseq
    %v1048 = vshrl.u32 %v1047, 7
    %v1049 = vsub.s32 %v1046, %v1048
    %v1050 = vrot.slane %v1036, %v1049
    %v1051 = vcombine.low %v1018, %v1034
    %v1052 = vcombine.high %v1018, %v1034
    %v1054 = vunpack.c.l.s4 1934713408
    %v1055 = vunpack.c.0.s8 %v1054
    %v1056 = vlaneseq
    %v1057 = vshrl.u32 %v1056, 7
    %v1058 = vsub.s32 %v1055, %v1057
    %v1059 = vrot.slane %v1051, %v1058
    %v1061 = vunpack.c.l.s4 1934713408
    %v1062 = vunpack.c.0.s8 %v1061
    %v1063 = vlaneseq
    %v1064 = vshrl.u32 %v1063, 7
    %v1065 = vsub.s32 %v1062, %v1064
    %v1066 = vrot.slane %v1052, %v1065
    %v1067 = vcombine.high %v1043, 0.0
    %v1068 = vcombine.high %v1050, 0.0
    %v1069 = vcombine.high %v1059, 0.0
    %v1070 = vcombine.high %v1066, 0.0
    %v1071 = vcombine.low %v388, %v994
    %v1072 = vcombine.high %v388, %v994
    %v1074 = vunpack.c.l.s4 1983009808
    %v1075 = vunpack.c.0.s8 %v1074
    %v1076 = vlaneseq
    %v1077 = vshrl.u32 %v1076, 7
    %v1078 = vsub.s32 %v1075, %v1077
    %v1079 = vrot.slane %v1071, %v1078
    %v1081 = vunpack.c.l.s4 1983009808
    %v1082 = vunpack.c.0.s8 %v1081
    %v1083 = vlaneseq
    %v1084 = vshrl.u32 %v1083, 7
    %v1085 = vsub.s32 %v1082, %v1084
    %v1086 = vrot.slane %v1072, %v1085
    %v1087 = vcombine.low %v988, %v1000
    %v1088 = vcombine.high %v988, %v1000
    %v1090 = vunpack.c.l.s4 1983009808
    %v1091 = vunpack.c.0.s8 %v1090
    %v1092 = vlaneseq
    %v1093 = vshrl.u32 %v1092, 7
    %v1094 = vsub.s32 %v1091, %v1093
    %v1095 = vrot.slane %v1087, %v1094
    %v1097 = vunpack.c.l.s4 1983009808
    %v1098 = vunpack.c.0.s8 %v1097
    %v1099 = vlaneseq
    %v1100 = vshrl.u32 %v1099, 7
    %v1101 = vsub.s32 %v1098, %v1100
    %v1102 = vrot.slane %v1088, %v1101
    %v1103 = vcombine.low %v1079, %v1095
    %v1104 = vcombine.high %v1079, %v1095
    %v1106 = vunpack.c.l.s4 1934713408
    %v1107 = vunpack.c.0.s8 %v1106
    %v1108 = vlaneseq
    %v1109 = vshrl.u32 %v1108, 7
    %v1110 = vsub.s32 %v1107, %v1109
    %v1111 = vrot.slane %v1103, %v1110
    %v1113 = vunpack.c.l.s4 1934713408
    %v1114 = vunpack.c.0.s8 %v1113
    %v1115 = vlaneseq
    %v1116 = vshrl.u32 %v1115, 7
    %v1117 = vsub.s32 %v1114, %v1116
    %v1118 = vrot.slane %v1104, %v1117
    %v1119 = vcombine.low %v1086, %v1102
    %v1120 = vcombine.high %v1086, %v1102
    %v1122 = vunpack.c.l.s4 1934713408
    %v1123 = vunpack.c.0.s8 %v1122
    %v1124 = vlaneseq
    %v1125 = vshrl.u32 %v1124, 7
    %v1126 = vsub.s32 %v1123, %v1125
    %v1127 = vrot.slane %v1119, %v1126
    %v1129 = vunpack.c.l.s4 1934713408
    %v1130 = vunpack.c.0.s8 %v1129
    %v1131 = vlaneseq
    %v1132 = vshrl.u32 %v1131, 7
    %v1133 = vsub.s32 %v1130, %v1132
    %v1134 = vrot.slane %v1120, %v1133
    %v1135 = vcombine.high %v1111, 0.0
    %v1136 = vcombine.high %v1118, 0.0
    %v1137 = vcombine.high %v1127, 0.0
    %v1138 = vcombine.high %v1134, 0.0
    %v1139 = vcombine.low %v1043, %v1050
    %v1141 = vunpack.c.l.s4 1983009808
    %v1142 = vunpack.c.0.s8 %v1141
    %v1143 = vlaneseq
    %v1144 = vshrl.u32 %v1143, 7
    %v1145 = vsub.s32 %v1142, %v1144
    %v1146 = vrot.slane %v1139, %v1145
    %v1147 = vcombine.low %v1067, %v1068
    %v1149 = vunpack.c.l.s4 1983009808
    %v1150 = vunpack.c.0.s8 %v1149
    %v1151 = vlaneseq
    %v1152 = vshrl.u32 %v1151, 7
    %v1153 = vsub.s32 %v1150, %v1152
    %v1154 = vrot.slane %v1147, %v1153
    %v1155 = vcombine.low %v1059, %v1066
    %v1157 = vunpack.c.l.s4 1983009808
    %v1158 = vunpack.c.0.s8 %v1157
    %v1159 = vlaneseq
    %v1160 = vshrl.u32 %v1159, 7
    %v1161 = vsub.s32 %v1158, %v1160
    %v1162 = vrot.slane %v1155, %v1161
    %v1163 = vcombine.low %v1069, %v1070
    %v1165 = vunpack.c.l.s4 1983009808
    %v1166 = vunpack.c.0.s8 %v1165
    %v1167 = vlaneseq
    %v1168 = vshrl.u32 %v1167, 7
    %v1169 = vsub.s32 %v1166, %v1168
    %v1170 = vrot.slane %v1163, %v1169
    %v1171 = vcombine.low %v1146, %v1154
    %v1172 = vcombine.high %v1146, %v1154
    %v1174 = vunpack.c.l.s4 1934713408
    %v1175 = vunpack.c.0.s8 %v1174
    %v1176 = vlaneseq
    %v1177 = vshrl.u32 %v1176, 7
    %v1178 = vsub.s32 %v1175, %v1177
    %v1179 = vrot.slane %v1171, %v1178
    %v1181 = vunpack.c.l.s4 1934713408
    %v1182 = vunpack.c.0.s8 %v1181
    %v1183 = vlaneseq
    %v1184 = vshrl.u32 %v1183, 7
    %v1185 = vsub.s32 %v1182, %v1184
    %v1186 = vrot.slane %v1172, %v1185
    %v1187 = vcombine.low %v1162, %v1170
    %v1188 = vcombine.high %v1162, %v1170
    %v1190 = vunpack.c.l.s4 1934713408
    %v1191 = vunpack.c.0.s8 %v1190
    %v1192 = vlaneseq
    %v1193 = vshrl.u32 %v1192, 7
    %v1194 = vsub.s32 %v1191, %v1193
    %v1195 = vrot.slane %v1187, %v1194
    %v1197 = vunpack.c.l.s4 1934713408
    %v1198 = vunpack.c.0.s8 %v1197
    %v1199 = vlaneseq
    %v1200 = vshrl.u32 %v1199, 7
    %v1201 = vsub.s32 %v1198, %v1200
    %v1202 = vrot.slane %v1188, %v1201
    %v1203 = vcombine.low %v1179, %v1195
    %v1204 = vcombine.high %v1179, %v1195
    %v1205 = vcombine.low %v1186, %v1202
    %v1206 = vcombine.high %v1186, %v1202
    %v1207 = vcombine.low %v1111, %v1118
    %v1209 = vunpack.c.l.s4 1983009808
    %v1210 = vunpack.c.0.s8 %v1209
    %v1211 = vlaneseq
    %v1212 = vshrl.u32 %v1211, 7
    %v1213 = vsub.s32 %v1210, %v1212
    %v1214 = vrot.slane %v1207, %v1213
    %v1215 = vcombine.low %v1135, %v1136
    %v1217 = vunpack.c.l.s4 1983009808
    %v1218 = vunpack.c.0.s8 %v1217
    %v1219 = vlaneseq
    %v1220 = vshrl.u32 %v1219, 7
    %v1221 = vsub.s32 %v1218, %v1220
    %v1222 = vrot.slane %v1215, %v1221
    %v1223 = vcombine.low %v1127, %v1134
    %v1225 = vunpack.c.l.s4 1983009808
    %v1226 = vunpack.c.0.s8 %v1225
    %v1227 = vlaneseq
    %v1228 = vshrl.u32 %v1227, 7
    %v1229 = vsub.s32 %v1226, %v1228
    %v1230 = vrot.slane %v1223, %v1229
    %v1231 = vcombine.low %v1137, %v1138
    %v1233 = vunpack.c.l.s4 1983009808
    %v1234 = vunpack.c.0.s8 %v1233
    %v1235 = vlaneseq
    %v1236 = vshrl.u32 %v1235, 7
    %v1237 = vsub.s32 %v1234, %v1236
    %v1238 = vrot.slane %v1231, %v1237
    %v1239 = vcombine.low %v1214, %v1222
    %v1240 = vcombine.high %v1214, %v1222
    %v1242 = vunpack.c.l.s4 1934713408
    %v1243 = vunpack.c.0.s8 %v1242
    %v1244 = vlaneseq
    %v1245 = vshrl.u32 %v1244, 7
    %v1246 = vsub.s32 %v1243, %v1245
    %v1247 = vrot.slane %v1239, %v1246
    %v1249 = vunpack.c.l.s4 1934713408
    %v1250 = vunpack.c.0.s8 %v1249
    %v1251 = vlaneseq
    %v1252 = vshrl.u32 %v1251, 7
    %v1253 = vsub.s32 %v1250, %v1252
    %v1254 = vrot.slane %v1240, %v1253
    %v1255 = vcombine.low %v1230, %v1238
    %v1256 = vcombine.high %v1230, %v1238
    %v1258 = vunpack.c.l.s4 1934713408
    %v1259 = vunpack.c.0.s8 %v1258
    %v1260 = vlaneseq
    %v1261 = vshrl.u32 %v1260, 7
    %v1262 = vsub.s32 %v1259, %v1261
    %v1263 = vrot.slane %v1255, %v1262
    %v1265 = vunpack.c.l.s4 1934713408
    %v1266 = vunpack.c.0.s8 %v1265
    %v1267 = vlaneseq
    %v1268 = vshrl.u32 %v1267, 7
    %v1269 = vsub.s32 %v1266, %v1268
    %v1270 = vrot.slane %v1256, %v1269
    %v1271 = vcombine.low %v1247, %v1263
    %v1272 = vcombine.high %v1247, %v1263
    %v1273 = vcombine.low %v1254, %v1270
    %v1274 = vcombine.high %v1254, %v1270
    %vm1275 = vcmask 261120
    %v1277 = vsel %vm1275, %v683, 0
    %v1280 = vsel %vm1275, %v911, 0
    %1282 = vmatprep.subr.mxu0 0.0
    %1283 = vmatpush1.xpose.msra.mxu0 %v1280
    %1284 = vmatprep.subr.mxu0 0.0
    %1285 = vmatpush1.xpose.msra.mxu0 0.0
    %1286 = vmatprep.subr.mxu0 0.0
    %1287 = vmatpush1.xpose.msra.mxu0 0.0
    %1288 = vmatprep.subr.mxu0 0.0
    %1289 = vmatpush1.xpose.msra.mxu0 0.0
    %1290 = vmatprep.subr.mxu0 0.0
    %1291 = vmatpush1.xpose.msra.mxu0 0.0
    %1292 = vmatprep.subr.mxu0 0.0
    %1293 = vmatpush1.xpose.msra.mxu0 0.0
    %1294 = vmatprep.subr.mxu0 0.0
    %1295 = vmatpush1.xpose.msra.mxu0 0.0
    %1296 = vmatprep.subr.mxu0 0.0
    %1297 = vmatpush1.xpose.msra.mxu0 0.0
    %1298 = vmatprep.subr.mxu0 0.0
    %1299 = vmatpush1.xpose.msra.mxu0 0.0
    %1300 = vmatprep.subr.mxu0 0.0
    %1301 = vmatpush1.xpose.msra.mxu0 0.0
    %1302 = vmatprep.subr.mxu0 0.0
    %1303 = vmatpush1.xpose.msra.mxu0 0.0
    %1304 = vmatprep.subr.mxu0 0.0
    %1305 = vmatpush1.xpose.msra.mxu0 0.0
    %1306 = vmatprep.subr.mxu0 0.0
    %1307 = vmatpush1.xpose.msra.mxu0 0.0
    %1308 = vmatprep.subr.mxu0 0.0
    %1309 = vmatpush1.xpose.msra.mxu0 0.0
    %1310 = vmatprep.subr.mxu0 0.0
    %1311 = vmatpush1.xpose.msra.mxu0 0.0
    %1312 = vmatprep.subr.mxu0 0.0
    %1313 = vmatpush1.xpose.msra.mxu0 0.0
    %1314 = vmatprep.subr.mxu0 0.0
    %1315 = vmatpush1.xpose.msra.mxu0 0.0
    %1316 = vmatprep.subr.mxu0 0.0
    %1317 = vmatpush1.xpose.msra.mxu0 0.0
    %1318 = vmatprep.subr.mxu0 0.0
    %1319 = vmatpush1.xpose.msra.mxu0 0.0
    %1320 = vmatprep.subr.mxu0 0.0
    %1321 = vmatpush1.xpose.msra.mxu0 0.0
    %1322 = vmatprep.subr.mxu0 0.0
    %1323 = vmatpush1.xpose.msra.mxu0 0.0
    %1324 = vmatprep.subr.mxu0 0.0
    %1325 = vmatpush1.xpose.msra.mxu0 0.0
    %1326 = vmatprep.subr.mxu0 0.0
    %1327 = vmatpush1.xpose.msra.mxu0 0.0
    %1328 = vmatprep.subr.mxu0 0.0
    %1329 = vmatpush1.xpose.msra.mxu0 0.0
    %1330 = vmatprep.subr.mxu0 0.0
    %1331 = vmatpush1.xpose.msra.mxu0 0.0
    %1332 = vmatprep.subr.mxu0 0.0
    %1333 = vmatpush1.xpose.msra.mxu0 0.0
    %1334 = vmatprep.subr.mxu0 0.0
    %1335 = vmatpush1.xpose.msra.mxu0 0.0
    %1336 = vmatprep.subr.mxu0 0.0
    %1337 = vmatpush1.xpose.msra.mxu0 0.0
    %1338 = vmatprep.subr.mxu0 0.0
    %1339 = vmatpush1.xpose.msra.mxu0 0.0
    %1340 = vmatprep.subr.mxu0 0.0
    %1341 = vmatpush1.xpose.msra.mxu0 0.0
    %1342 = vmatprep.subr.mxu0 0.0
    %1343 = vmatpush1.xpose.msra.mxu0 0.0
    %1344 = vmatprep.subr.mxu0 0.0
    %1345 = vmatpush1.xpose.msra.mxu0 0.0
    %1346 = vmatprep.mubr.f32.mxu0 0.0
    %1347 = vmatmul.mubr.f32.gmra.mrb[0].mxu0 %v1277
    %v1348 = vpop.f32.mrb[0].mxu0
    %v1349 = vadd.f32 0.0, %v1348
    %v1350 = vpop.f32.mrb[0].mxu0
    %1351 = vdwg.mxu0
    %v1353 = vsel %vm1275, %v684, 0
    %v1356 = vsel %vm1275, %v912, 0
    %1358 = vmatprep.subr.mxu0 0.0
    %1359 = vmatpush1.xpose.msra.mxu0 %v1356
    %1360 = vmatprep.subr.mxu0 0.0
    %1361 = vmatpush1.xpose.msra.mxu0 0.0
    %1362 = vmatprep.subr.mxu0 0.0
    %1363 = vmatpush1.xpose.msra.mxu0 0.0
    %1364 = vmatprep.subr.mxu0 0.0
    %1365 = vmatpush1.xpose.msra.mxu0 0.0
    %1366 = vmatprep.subr.mxu0 0.0
    %1367 = vmatpush1.xpose.msra.mxu0 0.0
    %1368 = vmatprep.subr.mxu0 0.0
    %1369 = vmatpush1.xpose.msra.mxu0 0.0
    %1370 = vmatprep.subr.mxu0 0.0
    %1371 = vmatpush1.xpose.msra.mxu0 0.0
    %1372 = vmatprep.subr.mxu0 0.0
    %1373 = vmatpush1.xpose.msra.mxu0 0.0
    %1374 = vmatprep.subr.mxu0 0.0
    %1375 = vmatpush1.xpose.msra.mxu0 0.0
    %1376 = vmatprep.subr.mxu0 0.0
    %1377 = vmatpush1.xpose.msra.mxu0 0.0
    %1378 = vmatprep.subr.mxu0 0.0
    %1379 = vmatpush1.xpose.msra.mxu0 0.0
    %1380 = vmatprep.subr.mxu0 0.0
    %1381 = vmatpush1.xpose.msra.mxu0 0.0
    %1382 = vmatprep.subr.mxu0 0.0
    %1383 = vmatpush1.xpose.msra.mxu0 0.0
    %1384 = vmatprep.subr.mxu0 0.0
    %1385 = vmatpush1.xpose.msra.mxu0 0.0
    %1386 = vmatprep.subr.mxu0 0.0
    %1387 = vmatpush1.xpose.msra.mxu0 0.0
    %1388 = vmatprep.subr.mxu0 0.0
    %1389 = vmatpush1.xpose.msra.mxu0 0.0
    %1390 = vmatprep.subr.mxu0 0.0
    %1391 = vmatpush1.xpose.msra.mxu0 0.0
    %1392 = vmatprep.subr.mxu0 0.0
    %1393 = vmatpush1.xpose.msra.mxu0 0.0
    %1394 = vmatprep.subr.mxu0 0.0
    %1395 = vmatpush1.xpose.msra.mxu0 0.0
    %1396 = vmatprep.subr.mxu0 0.0
    %1397 = vmatpush1.xpose.msra.mxu0 0.0
    %1398 = vmatprep.subr.mxu0 0.0
    %1399 = vmatpush1.xpose.msra.mxu0 0.0
    %1400 = vmatprep.subr.mxu0 0.0
    %1401 = vmatpush1.xpose.msra.mxu0 0.0
    %1402 = vmatprep.subr.mxu0 0.0
    %1403 = vmatpush1.xpose.msra.mxu0 0.0
    %1404 = vmatprep.subr.mxu0 0.0
    %1405 = vmatpush1.xpose.msra.mxu0 0.0
    %1406 = vmatprep.subr.mxu0 0.0
    %1407 = vmatpush1.xpose.msra.mxu0 0.0
    %1408 = vmatprep.subr.mxu0 0.0
    %1409 = vmatpush1.xpose.msra.mxu0 0.0
    %1410 = vmatprep.subr.mxu0 0.0
    %1411 = vmatpush1.xpose.msra.mxu0 0.0
    %1412 = vmatprep.subr.mxu0 0.0
    %1413 = vmatpush1.xpose.msra.mxu0 0.0
    %1414 = vmatprep.subr.mxu0 0.0
    %1415 = vmatpush1.xpose.msra.mxu0 0.0
    %1416 = vmatprep.subr.mxu0 0.0
    %1417 = vmatpush1.xpose.msra.mxu0 0.0
    %1418 = vmatprep.subr.mxu0 0.0
    %1419 = vmatpush1.xpose.msra.mxu0 0.0
    %1420 = vmatprep.subr.mxu0 0.0
    %1421 = vmatpush1.xpose.msra.mxu0 0.0
    %1422 = vmatprep.mubr.f32.mxu0 0.0
    %1423 = vmatmul.mubr.f32.gmra.mrb[0].mxu0 %v1353
    %v1424 = vpop.f32.mrb[0].mxu0
    %v1425 = vadd.f32 0.0, %v1424
    %v1426 = vpop.f32.mrb[0].mxu0
    %1427 = vdwg.mxu0
    %v1429 = vsel %vm1275, %v685, 0
    %v1432 = vsel %vm1275, %v913, 0
    %1434 = vmatprep.subr.mxu0 0.0
    %1435 = vmatpush1.xpose.msra.mxu0 %v1432
    %1436 = vmatprep.subr.mxu0 0.0
    %1437 = vmatpush1.xpose.msra.mxu0 0.0
    %1438 = vmatprep.subr.mxu0 0.0
    %1439 = vmatpush1.xpose.msra.mxu0 0.0
    %1440 = vmatprep.subr.mxu0 0.0
    %1441 = vmatpush1.xpose.msra.mxu0 0.0
    %1442 = vmatprep.subr.mxu0 0.0
    %1443 = vmatpush1.xpose.msra.mxu0 0.0
    %1444 = vmatprep.subr.mxu0 0.0
    %1445 = vmatpush1.xpose.msra.mxu0 0.0
    %1446 = vmatprep.subr.mxu0 0.0
    %1447 = vmatpush1.xpose.msra.mxu0 0.0
    %1448 = vmatprep.subr.mxu0 0.0
    %1449 = vmatpush1.xpose.msra.mxu0 0.0
    %1450 = vmatprep.subr.mxu0 0.0
    %1451 = vmatpush1.xpose.msra.mxu0 0.0
    %1452 = vmatprep.subr.mxu0 0.0
    %1453 = vmatpush1.xpose.msra.mxu0 0.0
    %1454 = vmatprep.subr.mxu0 0.0
    %1455 = vmatpush1.xpose.msra.mxu0 0.0
    %1456 = vmatprep.subr.mxu0 0.0
    %1457 = vmatpush1.xpose.msra.mxu0 0.0
    %1458 = vmatprep.subr.mxu0 0.0
    %1459 = vmatpush1.xpose.msra.mxu0 0.0
    %1460 = vmatprep.subr.mxu0 0.0
    %1461 = vmatpush1.xpose.msra.mxu0 0.0
    %1462 = vmatprep.subr.mxu0 0.0
    %1463 = vmatpush1.xpose.msra.mxu0 0.0
    %1464 = vmatprep.subr.mxu0 0.0
    %1465 = vmatpush1.xpose.msra.mxu0 0.0
    %1466 = vmatprep.subr.mxu0 0.0
    %1467 = vmatpush1.xpose.msra.mxu0 0.0
    %1468 = vmatprep.subr.mxu0 0.0
    %1469 = vmatpush1.xpose.msra.mxu0 0.0
    %1470 = vmatprep.subr.mxu0 0.0
    %1471 = vmatpush1.xpose.msra.mxu0 0.0
    %1472 = vmatprep.subr.mxu0 0.0
    %1473 = vmatpush1.xpose.msra.mxu0 0.0
    %1474 = vmatprep.subr.mxu0 0.0
    %1475 = vmatpush1.xpose.msra.mxu0 0.0
    %1476 = vmatprep.subr.mxu0 0.0
    %1477 = vmatpush1.xpose.msra.mxu0 0.0
    %1478 = vmatprep.subr.mxu0 0.0
    %1479 = vmatpush1.xpose.msra.mxu0 0.0
    %1480 = vmatprep.subr.mxu0 0.0
    %1481 = vmatpush1.xpose.msra.mxu0 0.0
    %1482 = vmatprep.subr.mxu0 0.0
    %1483 = vmatpush1.xpose.msra.mxu0 0.0
    %1484 = vmatprep.subr.mxu0 0.0
    %1485 = vmatpush1.xpose.msra.mxu0 0.0
    %1486 = vmatprep.subr.mxu0 0.0
    %1487 = vmatpush1.xpose.msra.mxu0 0.0
    %1488 = vmatprep.subr.mxu0 0.0
    %1489 = vmatpush1.xpose.msra.mxu0 0.0
    %1490 = vmatprep.subr.mxu0 0.0
    %1491 = vmatpush1.xpose.msra.mxu0 0.0
    %1492 = vmatprep.subr.mxu0 0.0
    %1493 = vmatpush1.xpose.msra.mxu0 0.0
    %1494 = vmatprep.subr.mxu0 0.0
    %1495 = vmatpush1.xpose.msra.mxu0 0.0
    %1496 = vmatprep.subr.mxu0 0.0
    %1497 = vmatpush1.xpose.msra.mxu0 0.0
    %1498 = vmatprep.mubr.f32.mxu0 0.0
    %1499 = vmatmul.mubr.f32.gmra.mrb[0].mxu0 %v1429
    %v1500 = vpop.f32.mrb[0].mxu0
    %v1501 = vadd.f32 0.0, %v1500
    %v1502 = vpop.f32.mrb[0].mxu0
    %1503 = vdwg.mxu0
    %v1505 = vsel %vm1275, %v686, 0
    %v1508 = vsel %vm1275, %v914, 0
    %1510 = vmatprep.subr.mxu0 0.0
    %1511 = vmatpush1.xpose.msra.mxu0 %v1508
    %1512 = vmatprep.subr.mxu0 0.0
    %1513 = vmatpush1.xpose.msra.mxu0 0.0
    %1514 = vmatprep.subr.mxu0 0.0
    %1515 = vmatpush1.xpose.msra.mxu0 0.0
    %1516 = vmatprep.subr.mxu0 0.0
    %1517 = vmatpush1.xpose.msra.mxu0 0.0
    %1518 = vmatprep.subr.mxu0 0.0
    %1519 = vmatpush1.xpose.msra.mxu0 0.0
    %1520 = vmatprep.subr.mxu0 0.0
    %1521 = vmatpush1.xpose.msra.mxu0 0.0
    %1522 = vmatprep.subr.mxu0 0.0
    %1523 = vmatpush1.xpose.msra.mxu0 0.0
    %1524 = vmatprep.subr.mxu0 0.0
    %1525 = vmatpush1.xpose.msra.mxu0 0.0
    %1526 = vmatprep.subr.mxu0 0.0
    %1527 = vmatpush1.xpose.msra.mxu0 0.0
    %1528 = vmatprep.subr.mxu0 0.0
    %1529 = vmatpush1.xpose.msra.mxu0 0.0
    %1530 = vmatprep.subr.mxu0 0.0
    %1531 = vmatpush1.xpose.msra.mxu0 0.0
    %1532 = vmatprep.subr.mxu0 0.0
    %1533 = vmatpush1.xpose.msra.mxu0 0.0
    %1534 = vmatprep.subr.mxu0 0.0
    %1535 = vmatpush1.xpose.msra.mxu0 0.0
    %1536 = vmatprep.subr.mxu0 0.0
    %1537 = vmatpush1.xpose.msra.mxu0 0.0
    %1538 = vmatprep.subr.mxu0 0.0
    %1539 = vmatpush1.xpose.msra.mxu0 0.0
    %1540 = vmatprep.subr.mxu0 0.0
    %1541 = vmatpush1.xpose.msra.mxu0 0.0
    %1542 = vmatprep.subr.mxu0 0.0
    %1543 = vmatpush1.xpose.msra.mxu0 0.0
    %1544 = vmatprep.subr.mxu0 0.0
    %1545 = vmatpush1.xpose.msra.mxu0 0.0
    %1546 = vmatprep.subr.mxu0 0.0
    %1547 = vmatpush1.xpose.msra.mxu0 0.0
    %1548 = vmatprep.subr.mxu0 0.0
    %1549 = vmatpush1.xpose.msra.mxu0 0.0
    %1550 = vmatprep.subr.mxu0 0.0
    %1551 = vmatpush1.xpose.msra.mxu0 0.0
    %1552 = vmatprep.subr.mxu0 0.0
    %1553 = vmatpush1.xpose.msra.mxu0 0.0
    %1554 = vmatprep.subr.mxu0 0.0
    %1555 = vmatpush1.xpose.msra.mxu0 0.0
    %1556 = vmatprep.subr.mxu0 0.0
    %1557 = vmatpush1.xpose.msra.mxu0 0.0
    %1558 = vmatprep.subr.mxu0 0.0
    %1559 = vmatpush1.xpose.msra.mxu0 0.0
    %1560 = vmatprep.subr.mxu0 0.0
    %1561 = vmatpush1.xpose.msra.mxu0 0.0
    %1562 = vmatprep.subr.mxu0 0.0
    %1563 = vmatpush1.xpose.msra.mxu0 0.0
    %1564 = vmatprep.subr.mxu0 0.0
    %1565 = vmatpush1.xpose.msra.mxu0 0.0
    %1566 = vmatprep.subr.mxu0 0.0
    %1567 = vmatpush1.xpose.msra.mxu0 0.0
    %1568 = vmatprep.subr.mxu0 0.0
    %1569 = vmatpush1.xpose.msra.mxu0 0.0
    %1570 = vmatprep.subr.mxu0 0.0
    %1571 = vmatpush1.xpose.msra.mxu0 0.0
    %1572 = vmatprep.subr.mxu0 0.0
    %1573 = vmatpush1.xpose.msra.mxu0 0.0
    %1574 = vmatprep.mubr.f32.mxu0 0.0
    %1575 = vmatmul.mubr.f32.gmra.mrb[0].mxu0 %v1505
    %v1576 = vpop.f32.mrb[0].mxu0
    %v1577 = vadd.f32 0.0, %v1576
    %v1578 = vpop.f32.mrb[0].mxu0
    %1579 = vdwg.mxu0
    %v1581 = vsel %vm1275, %v687, 0
    %v1584 = vsel %vm1275, %v979, 0
    %1586 = vmatprep.subr.mxu0 0.0
    %1587 = vmatpush1.xpose.msra.mxu0 %v1584
    %1588 = vmatprep.subr.mxu0 0.0
    %1589 = vmatpush1.xpose.msra.mxu0 0.0
    %1590 = vmatprep.subr.mxu0 0.0
    %1591 = vmatpush1.xpose.msra.mxu0 0.0
    %1592 = vmatprep.subr.mxu0 0.0
    %1593 = vmatpush1.xpose.msra.mxu0 0.0
    %1594 = vmatprep.subr.mxu0 0.0
    %1595 = vmatpush1.xpose.msra.mxu0 0.0
    %1596 = vmatprep.subr.mxu0 0.0
    %1597 = vmatpush1.xpose.msra.mxu0 0.0
    %1598 = vmatprep.subr.mxu0 0.0
    %1599 = vmatpush1.xpose.msra.mxu0 0.0
    %1600 = vmatprep.subr.mxu0 0.0
    %1601 = vmatpush1.xpose.msra.mxu0 0.0
    %1602 = vmatprep.subr.mxu0 0.0
    %1603 = vmatpush1.xpose.msra.mxu0 0.0
    %1604 = vmatprep.subr.mxu0 0.0
    %1605 = vmatpush1.xpose.msra.mxu0 0.0
    %1606 = vmatprep.subr.mxu0 0.0
    %1607 = vmatpush1.xpose.msra.mxu0 0.0
    %1608 = vmatprep.subr.mxu0 0.0
    %1609 = vmatpush1.xpose.msra.mxu0 0.0
    %1610 = vmatprep.subr.mxu0 0.0
    %1611 = vmatpush1.xpose.msra.mxu0 0.0
    %1612 = vmatprep.subr.mxu0 0.0
    %1613 = vmatpush1.xpose.msra.mxu0 0.0
    %1614 = vmatprep.subr.mxu0 0.0
    %1615 = vmatpush1.xpose.msra.mxu0 0.0
    %1616 = vmatprep.subr.mxu0 0.0
    %1617 = vmatpush1.xpose.msra.mxu0 0.0
    %1618 = vmatprep.subr.mxu0 0.0
    %1619 = vmatpush1.xpose.msra.mxu0 0.0
    %1620 = vmatprep.subr.mxu0 0.0
    %1621 = vmatpush1.xpose.msra.mxu0 0.0
    %1622 = vmatprep.subr.mxu0 0.0
    %1623 = vmatpush1.xpose.msra.mxu0 0.0
    %1624 = vmatprep.subr.mxu0 0.0
    %1625 = vmatpush1.xpose.msra.mxu0 0.0
    %1626 = vmatprep.subr.mxu0 0.0
    %1627 = vmatpush1.xpose.msra.mxu0 0.0
    %1628 = vmatprep.subr.mxu0 0.0
    %1629 = vmatpush1.xpose.msra.mxu0 0.0
    %1630 = vmatprep.subr.mxu0 0.0
    %1631 = vmatpush1.xpose.msra.mxu0 0.0
    %1632 = vmatprep.subr.mxu0 0.0
    %1633 = vmatpush1.xpose.msra.mxu0 0.0
    %1634 = vmatprep.subr.mxu0 0.0
    %1635 = vmatpush1.xpose.msra.mxu0 0.0
    %1636 = vmatprep.subr.mxu0 0.0
    %1637 = vmatpush1.xpose.msra.mxu0 0.0
    %1638 = vmatprep.subr.mxu0 0.0
    %1639 = vmatpush1.xpose.msra.mxu0 0.0
    %1640 = vmatprep.subr.mxu0 0.0
    %1641 = vmatpush1.xpose.msra.mxu0 0.0
    %1642 = vmatprep.subr.mxu0 0.0
    %1643 = vmatpush1.xpose.msra.mxu0 0.0
    %1644 = vmatprep.subr.mxu0 0.0
    %1645 = vmatpush1.xpose.msra.mxu0 0.0
    %1646 = vmatprep.subr.mxu0 0.0
    %1647 = vmatpush1.xpose.msra.mxu0 0.0
    %1648 = vmatprep.subr.mxu0 0.0
    %1649 = vmatpush1.xpose.msra.mxu0 0.0
    %1650 = vmatprep.mubr.f32.mxu0 0.0
    %1651 = vmatmul.mubr.f32.gmra.mrb[0].mxu0 %v1581
    %v1652 = vpop.f32.mrb[0].mxu0
    %v1653 = vadd.f32 0.0, %v1652
    %v1654 = vpop.f32.mrb[0].mxu0
    %1655 = vdwg.mxu0
    %v1657 = vsel %vm1275, %v688, 0
    %v1660 = vsel %vm1275, %v980, 0
    %1662 = vmatprep.subr.mxu0 0.0
    %1663 = vmatpush1.xpose.msra.mxu0 %v1660
    %1664 = vmatprep.subr.mxu0 0.0
    %1665 = vmatpush1.xpose.msra.mxu0 0.0
    %1666 = vmatprep.subr.mxu0 0.0
    %1667 = vmatpush1.xpose.msra.mxu0 0.0
    %1668 = vmatprep.subr.mxu0 0.0
    %1669 = vmatpush1.xpose.msra.mxu0 0.0
    %1670 = vmatprep.subr.mxu0 0.0
    %1671 = vmatpush1.xpose.msra.mxu0 0.0
    %1672 = vmatprep.subr.mxu0 0.0
    %1673 = vmatpush1.xpose.msra.mxu0 0.0
    %1674 = vmatprep.subr.mxu0 0.0
    %1675 = vmatpush1.xpose.msra.mxu0 0.0
    %1676 = vmatprep.subr.mxu0 0.0
    %1677 = vmatpush1.xpose.msra.mxu0 0.0
    %1678 = vmatprep.subr.mxu0 0.0
    %1679 = vmatpush1.xpose.msra.mxu0 0.0
    %1680 = vmatprep.subr.mxu0 0.0
    %1681 = vmatpush1.xpose.msra.mxu0 0.0
    %1682 = vmatprep.subr.mxu0 0.0
    %1683 = vmatpush1.xpose.msra.mxu0 0.0
    %1684 = vmatprep.subr.mxu0 0.0
    %1685 = vmatpush1.xpose.msra.mxu0 0.0
    %1686 = vmatprep.subr.mxu0 0.0
    %1687 = vmatpush1.xpose.msra.mxu0 0.0
    %1688 = vmatprep.subr.mxu0 0.0
    %1689 = vmatpush1.xpose.msra.mxu0 0.0
    %1690 = vmatprep.subr.mxu0 0.0
    %1691 = vmatpush1.xpose.msra.mxu0 0.0
    %1692 = vmatprep.subr.mxu0 0.0
    %1693 = vmatpush1.xpose.msra.mxu0 0.0
    %1694 = vmatprep.subr.mxu0 0.0
    %1695 = vmatpush1.xpose.msra.mxu0 0.0
    %1696 = vmatprep.subr.mxu0 0.0
    %1697 = vmatpush1.xpose.msra.mxu0 0.0
    %1698 = vmatprep.subr.mxu0 0.0
    %1699 = vmatpush1.xpose.msra.mxu0 0.0
    %1700 = vmatprep.subr.mxu0 0.0
    %1701 = vmatpush1.xpose.msra.mxu0 0.0
    %1702 = vmatprep.subr.mxu0 0.0
    %1703 = vmatpush1.xpose.msra.mxu0 0.0
    %1704 = vmatprep.subr.mxu0 0.0
    %1705 = vmatpush1.xpose.msra.mxu0 0.0
    %1706 = vmatprep.subr.mxu0 0.0
    %1707 = vmatpush1.xpose.msra.mxu0 0.0
    %1708 = vmatprep.subr.mxu0 0.0
    %1709 = vmatpush1.xpose.msra.mxu0 0.0
    %1710 = vmatprep.subr.mxu0 0.0
    %1711 = vmatpush1.xpose.msra.mxu0 0.0
    %1712 = vmatprep.subr.mxu0 0.0
    %1713 = vmatpush1.xpose.msra.mxu0 0.0
    %1714 = vmatprep.subr.mxu0 0.0
    %1715 = vmatpush1.xpose.msra.mxu0 0.0
    %1716 = vmatprep.subr.mxu0 0.0
    %1717 = vmatpush1.xpose.msra.mxu0 0.0
    %1718 = vmatprep.subr.mxu0 0.0
    %1719 = vmatpush1.xpose.msra.mxu0 0.0
    %1720 = vmatprep.subr.mxu0 0.0
    %1721 = vmatpush1.xpose.msra.mxu0 0.0
    %1722 = vmatprep.subr.mxu0 0.0
    %1723 = vmatpush1.xpose.msra.mxu0 0.0
    %1724 = vmatprep.subr.mxu0 0.0
    %1725 = vmatpush1.xpose.msra.mxu0 0.0
    %1726 = vmatprep.mubr.f32.mxu0 0.0
    %1727 = vmatmul.mubr.f32.gmra.mrb[0].mxu0 %v1657
    %v1728 = vpop.f32.mrb[0].mxu0
    %v1729 = vadd.f32 0.0, %v1728
    %v1730 = vpop.f32.mrb[0].mxu0
    %1731 = vdwg.mxu0
    %v1733 = vsel %vm1275, %v689, 0
    %v1736 = vsel %vm1275, %v981, 0
    %1738 = vmatprep.subr.mxu0 0.0
    %1739 = vmatpush1.xpose.msra.mxu0 %v1736
    %1740 = vmatprep.subr.mxu0 0.0
    %1741 = vmatpush1.xpose.msra.mxu0 0.0
    %1742 = vmatprep.subr.mxu0 0.0
    %1743 = vmatpush1.xpose.msra.mxu0 0.0
    %1744 = vmatprep.subr.mxu0 0.0
    %1745 = vmatpush1.xpose.msra.mxu0 0.0
    %1746 = vmatprep.subr.mxu0 0.0
    %1747 = vmatpush1.xpose.msra.mxu0 0.0
    %1748 = vmatprep.subr.mxu0 0.0
    %1749 = vmatpush1.xpose.msra.mxu0 0.0
    %1750 = vmatprep.subr.mxu0 0.0
    %1751 = vmatpush1.xpose.msra.mxu0 0.0
    %1752 = vmatprep.subr.mxu0 0.0
    %1753 = vmatpush1.xpose.msra.mxu0 0.0
    %1754 = vmatprep.subr.mxu0 0.0
    %1755 = vmatpush1.xpose.msra.mxu0 0.0
    %1756 = vmatprep.subr.mxu0 0.0
    %1757 = vmatpush1.xpose.msra.mxu0 0.0
    %1758 = vmatprep.subr.mxu0 0.0
    %1759 = vmatpush1.xpose.msra.mxu0 0.0
    %1760 = vmatprep.subr.mxu0 0.0
    %1761 = vmatpush1.xpose.msra.mxu0 0.0
    %1762 = vmatprep.subr.mxu0 0.0
    %1763 = vmatpush1.xpose.msra.mxu0 0.0
    %1764 = vmatprep.subr.mxu0 0.0
    %1765 = vmatpush1.xpose.msra.mxu0 0.0
    %1766 = vmatprep.subr.mxu0 0.0
    %1767 = vmatpush1.xpose.msra.mxu0 0.0
    %1768 = vmatprep.subr.mxu0 0.0
    %1769 = vmatpush1.xpose.msra.mxu0 0.0
    %1770 = vmatprep.subr.mxu0 0.0
    %1771 = vmatpush1.xpose.msra.mxu0 0.0
    %1772 = vmatprep.subr.mxu0 0.0
    %1773 = vmatpush1.xpose.msra.mxu0 0.0
    %1774 = vmatprep.subr.mxu0 0.0
    %1775 = vmatpush1.xpose.msra.mxu0 0.0
    %1776 = vmatprep.subr.mxu0 0.0
    %1777 = vmatpush1.xpose.msra.mxu0 0.0
    %1778 = vmatprep.subr.mxu0 0.0
    %1779 = vmatpush1.xpose.msra.mxu0 0.0
    %1780 = vmatprep.subr.mxu0 0.0
    %1781 = vmatpush1.xpose.msra.mxu0 0.0
    %1782 = vmatprep.subr.mxu0 0.0
    %1783 = vmatpush1.xpose.msra.mxu0 0.0
    %1784 = vmatprep.subr.mxu0 0.0
    %1785 = vmatpush1.xpose.msra.mxu0 0.0
    %1786 = vmatprep.subr.mxu0 0.0
    %1787 = vmatpush1.xpose.msra.mxu0 0.0
    %1788 = vmatprep.subr.mxu0 0.0
    %1789 = vmatpush1.xpose.msra.mxu0 0.0
    %1790 = vmatprep.subr.mxu0 0.0
    %1791 = vmatpush1.xpose.msra.mxu0 0.0
    %1792 = vmatprep.subr.mxu0 0.0
    %1793 = vmatpush1.xpose.msra.mxu0 0.0
    %1794 = vmatprep.subr.mxu0 0.0
    %1795 = vmatpush1.xpose.msra.mxu0 0.0
    %1796 = vmatprep.subr.mxu0 0.0
    %1797 = vmatpush1.xpose.msra.mxu0 0.0
    %1798 = vmatprep.subr.mxu0 0.0
    %1799 = vmatpush1.xpose.msra.mxu0 0.0
    %1800 = vmatprep.subr.mxu0 0.0
    %1801 = vmatpush1.xpose.msra.mxu0 0.0
    %1802 = vmatprep.mubr.f32.mxu0 0.0
    %1803 = vmatmul.mubr.f32.gmra.mrb[0].mxu0 %v1733
    %v1804 = vpop.f32.mrb[0].mxu0
    %v1805 = vadd.f32 0.0, %v1804
    %v1806 = vpop.f32.mrb[0].mxu0
    %1807 = vdwg.mxu0
    %v1809 = vsel %vm1275, %v690, 0
    %v1812 = vsel %vm1275, %v982, 0
    %1814 = vmatprep.subr.mxu0 0.0
    %1815 = vmatpush1.xpose.msra.mxu0 %v1812
    %1816 = vmatprep.subr.mxu0 0.0
    %1817 = vmatpush1.xpose.msra.mxu0 0.0
    %1818 = vmatprep.subr.mxu0 0.0
    %1819 = vmatpush1.xpose.msra.mxu0 0.0
    %1820 = vmatprep.subr.mxu0 0.0
    %1821 = vmatpush1.xpose.msra.mxu0 0.0
    %1822 = vmatprep.subr.mxu0 0.0
    %1823 = vmatpush1.xpose.msra.mxu0 0.0
    %1824 = vmatprep.subr.mxu0 0.0
    %1825 = vmatpush1.xpose.msra.mxu0 0.0
    %1826 = vmatprep.subr.mxu0 0.0
    %1827 = vmatpush1.xpose.msra.mxu0 0.0
    %1828 = vmatprep.subr.mxu0 0.0
    %1829 = vmatpush1.xpose.msra.mxu0 0.0
    %1830 = vmatprep.subr.mxu0 0.0
    %1831 = vmatpush1.xpose.msra.mxu0 0.0
    %1832 = vmatprep.subr.mxu0 0.0
    %1833 = vmatpush1.xpose.msra.mxu0 0.0
    %1834 = vmatprep.subr.mxu0 0.0
    %1835 = vmatpush1.xpose.msra.mxu0 0.0
    %1836 = vmatprep.subr.mxu0 0.0
    %1837 = vmatpush1.xpose.msra.mxu0 0.0
    %1838 = vmatprep.subr.mxu0 0.0
    %1839 = vmatpush1.xpose.msra.mxu0 0.0
    %1840 = vmatprep.subr.mxu0 0.0
    %1841 = vmatpush1.xpose.msra.mxu0 0.0
    %1842 = vmatprep.subr.mxu0 0.0
    %1843 = vmatpush1.xpose.msra.mxu0 0.0
    %1844 = vmatprep.subr.mxu0 0.0
    %1845 = vmatpush1.xpose.msra.mxu0 0.0
    %1846 = vmatprep.subr.mxu0 0.0
    %1847 = vmatpush1.xpose.msra.mxu0 0.0
    %1848 = vmatprep.subr.mxu0 0.0
    %1849 = vmatpush1.xpose.msra.mxu0 0.0
    %1850 = vmatprep.subr.mxu0 0.0
    %1851 = vmatpush1.xpose.msra.mxu0 0.0
    %1852 = vmatprep.subr.mxu0 0.0
    %1853 = vmatpush1.xpose.msra.mxu0 0.0
    %1854 = vmatprep.subr.mxu0 0.0
    %1855 = vmatpush1.xpose.msra.mxu0 0.0
    %1856 = vmatprep.subr.mxu0 0.0
    %1857 = vmatpush1.xpose.msra.mxu0 0.0
    %1858 = vmatprep.subr.mxu0 0.0
    %1859 = vmatpush1.xpose.msra.mxu0 0.0
    %1860 = vmatprep.subr.mxu0 0.0
    %1861 = vmatpush1.xpose.msra.mxu0 0.0
    %1862 = vmatprep.subr.mxu0 0.0
    %1863 = vmatpush1.xpose.msra.mxu0 0.0
    %1864 = vmatprep.subr.mxu0 0.0
    %1865 = vmatpush1.xpose.msra.mxu0 0.0
    %1866 = vmatprep.subr.mxu0 0.0
    %1867 = vmatpush1.xpose.msra.mxu0 0.0
    %1868 = vmatprep.subr.mxu0 0.0
    %1869 = vmatpush1.xpose.msra.mxu0 0.0
    %1870 = vmatprep.subr.mxu0 0.0
    %1871 = vmatpush1.xpose.msra.mxu0 0.0
    %1872 = vmatprep.subr.mxu0 0.0
    %1873 = vmatpush1.xpose.msra.mxu0 0.0
    %1874 = vmatprep.subr.mxu0 0.0
    %1875 = vmatpush1.xpose.msra.mxu0 0.0
    %1876 = vmatprep.subr.mxu0 0.0
    %1877 = vmatpush1.xpose.msra.mxu0 0.0
    %1878 = vmatprep.mubr.f32.mxu0 0.0
    %1879 = vmatmul.mubr.f32.gmra.mrb[0].mxu0 %v1809
    %v1880 = vpop.f32.mrb[0].mxu0
    %v1881 = vadd.f32 0.0, %v1880
    %v1882 = vpop.f32.mrb[0].mxu0
    %1883 = vdwg.mxu0
    %v1884 = vlaneseq
    %v1885 = vshrl.u32 %v1884, 7
    %v1886 = vlaneseq
    %v1887 = vand.u32 %v1886, 127
    %vm1888 = vcmp.le.s32.totalorder %v1887, %v1885
    %v1889 = vsel %vm1888, 1, 0
    %vm1890 = vcmp.eq.s32.totalorder %v1889, 1
    %v1891 = vsel %vm1890, %v1349, -1e+09
    %v1892 = vsel %vm1890, %v1425, -1e+09
    %v1893 = vsel %vm1890, %v1501, -1e+09
    %v1894 = vsel %vm1890, %v1577, -1e+09
    %v1895 = vsel %vm1890, %v1653, -1e+09
    %v1896 = vsel %vm1890, %v1729, -1e+09
    %v1897 = vsel %vm1890, %v1805, -1e+09
    %v1898 = vsel %vm1890, %v1881, -1e+09
    %vm1899 = vcmask 64512
    %v1900 = vsel %vm1899, %v1891, -inf
    %1901 = vmax.xlane.f32.xlu0 %v1900
    %v1902 = vpop.xlane.xlu0 %1901
    %v1903 = vsel %vm1899, %v1892, -inf
    %1904 = vmax.xlane.f32.xlu0 %v1903
    %v1905 = vpop.xlane.xlu0 %1904
    %v1906 = vsel %vm1899, %v1893, -inf
    %1907 = vmax.xlane.f32.xlu0 %v1906
    %v1908 = vpop.xlane.xlu0 %1907
    %v1909 = vsel %vm1899, %v1894, -inf
    %1910 = vmax.xlane.f32.xlu0 %v1909
    %v1911 = vpop.xlane.xlu0 %1910
    %v1912 = vsel %vm1899, %v1895, -inf
    %1913 = vmax.xlane.f32.xlu0 %v1912
    %v1914 = vpop.xlane.xlu0 %1913
    %v1915 = vsel %vm1899, %v1896, -inf
    %1916 = vmax.xlane.f32.xlu0 %v1915
    %v1917 = vpop.xlane.xlu0 %1916
    %v1918 = vsel %vm1899, %v1897, -inf
    %1919 = vmax.xlane.f32.xlu0 %v1918
    %v1920 = vpop.xlane.xlu0 %1919
    %v1921 = vsel %vm1899, %v1898, -inf
    %1922 = vmax.xlane.f32.xlu0 %v1921
    %v1923 = vpop.xlane.xlu0 %1922
    %v1924 = vsub.f32 %v1891, %v1902
    %v1925 = vsub.f32 %v1892, %v1905
    %v1926 = vsub.f32 %v1893, %v1908
    %v1927 = vsub.f32 %v1894, %v1911
    %v1928 = vsub.f32 %v1895, %v1914
    %v1929 = vsub.f32 %v1896, %v1917
    %v1930 = vsub.f32 %v1897, %v1920
    %v1931 = vsub.f32 %v1898, %v1923
    %v1932 = vmul.f32 %v1924, 1.442695
    %v1933 = vpow.pop %v1932
    %v1934 = vmul.f32 %v1925, 1.442695
    %v1935 = vpow.pop %v1934
    %v1936 = vmul.f32 %v1926, 1.442695
    %v1937 = vpow.pop %v1936
    %v1938 = vmul.f32 %v1927, 1.442695
    %v1939 = vpow.pop %v1938
    %v1940 = vmul.f32 %v1928, 1.442695
    %v1941 = vpow.pop %v1940
    %v1942 = vmul.f32 %v1929, 1.442695
    %v1943 = vpow.pop %v1942
    %v1944 = vmul.f32 %v1930, 1.442695
    %v1945 = vpow.pop %v1944
    %v1946 = vmul.f32 %v1931, 1.442695
    %v1947 = vpow.pop %v1946
    %v1948 = vsel %vm1899, %v1933, 0.0
    %1949 = vadd.xlane.f32.xlu0 %v1948
    %v1950 = vpop.xlane.xlu0 %1949
    %v1951 = vsel %vm1899, %v1935, 0.0
    %1952 = vadd.xlane.f32.xlu0 %v1951
    %v1953 = vpop.xlane.xlu0 %1952
    %v1954 = vsel %vm1899, %v1937, 0.0
    %1955 = vadd.xlane.f32.xlu0 %v1954
    %v1956 = vpop.xlane.xlu0 %1955
    %v1957 = vsel %vm1899, %v1939, 0.0
    %1958 = vadd.xlane.f32.xlu0 %v1957
    %v1959 = vpop.xlane.xlu0 %1958
    %v1960 = vsel %vm1899, %v1941, 0.0
    %1961 = vadd.xlane.f32.xlu0 %v1960
    %v1962 = vpop.xlane.xlu0 %1961
    %v1963 = vsel %vm1899, %v1943, 0.0
    %1964 = vadd.xlane.f32.xlu0 %v1963
    %v1965 = vpop.xlane.xlu0 %1964
    %v1966 = vsel %vm1899, %v1945, 0.0
    %1967 = vadd.xlane.f32.xlu0 %v1966
    %v1968 = vpop.xlane.xlu0 %1967
    %v1969 = vsel %vm1899, %v1947, 0.0
    %1970 = vadd.xlane.f32.xlu0 %v1969
    %v1971 = vpop.xlane.xlu0 %1970
    %v1972 = vrcp.pop %v1950
    %v1973 = vrcp.pop %v1953
    %v1974 = vrcp.pop %v1956
    %v1975 = vrcp.pop %v1959
    %v1976 = vrcp.pop %v1962
    %v1977 = vrcp.pop %v1965
    %v1978 = vrcp.pop %v1968
    %v1979 = vrcp.pop %v1971
    %v1980 = vmul.f32 %v1933, %v1972
    %v1981 = vmul.f32 %v1935, %v1973
    %v1982 = vmul.f32 %v1937, %v1974
    %v1983 = vmul.f32 %v1939, %v1975
    %v1984 = vmul.f32 %v1941, %v1976
    %v1985 = vmul.f32 %v1943, %v1977
    %v1986 = vmul.f32 %v1945, %v1978
    %v1987 = vmul.f32 %v1947, %v1979
    %v1989 = vsel %vm1899, %v1980, 0
    %1991 = vmatprep.subr.mxu0 0.0
    %1992 = vmatpush1.msra.mxu0 %v1203
    %1993 = vmatprep.subr.mxu0 0.0
    %1994 = vmatpush1.msra.mxu0 0.0
    %1995 = vmatprep.subr.mxu0 0.0
    %1996 = vmatpush1.msra.mxu0 0.0
    %1997 = vmatprep.subr.mxu0 0.0
    %1998 = vmatpush1.msra.mxu0 0.0
    %1999 = vmatprep.subr.mxu0 0.0
    %2000 = vmatpush1.msra.mxu0 0.0
    %2001 = vmatprep.subr.mxu0 0.0
    %2002 = vmatpush1.msra.mxu0 0.0
    %2003 = vmatprep.subr.mxu0 0.0
    %2004 = vmatpush1.msra.mxu0 0.0
    %2005 = vmatprep.subr.mxu0 0.0
    %2006 = vmatpush1.msra.mxu0 0.0
    %2007 = vmatprep.subr.mxu0 0.0
    %2008 = vmatpush1.msra.mxu0 0.0
    %2009 = vmatprep.subr.mxu0 0.0
    %2010 = vmatpush1.msra.mxu0 0.0
    %2011 = vmatprep.subr.mxu0 0.0
    %2012 = vmatpush1.msra.mxu0 0.0
    %2013 = vmatprep.subr.mxu0 0.0
    %2014 = vmatpush1.msra.mxu0 0.0
    %2015 = vmatprep.subr.mxu0 0.0
    %2016 = vmatpush1.msra.mxu0 0.0
    %2017 = vmatprep.subr.mxu0 0.0
    %2018 = vmatpush1.msra.mxu0 0.0
    %2019 = vmatprep.subr.mxu0 0.0
    %2020 = vmatpush1.msra.mxu0 0.0
    %2021 = vmatprep.subr.mxu0 0.0
    %2022 = vmatpush1.msra.mxu0 0.0
    %2023 = vmatprep.subr.mxu0 0.0
    %2024 = vmatpush1.msra.mxu0 0.0
    %2025 = vmatprep.subr.mxu0 0.0
    %2026 = vmatpush1.msra.mxu0 0.0
    %2027 = vmatprep.subr.mxu0 0.0
    %2028 = vmatpush1.msra.mxu0 0.0
    %2029 = vmatprep.subr.mxu0 0.0
    %2030 = vmatpush1.msra.mxu0 0.0
    %2031 = vmatprep.subr.mxu0 0.0
    %2032 = vmatpush1.msra.mxu0 0.0
    %2033 = vmatprep.subr.mxu0 0.0
    %2034 = vmatpush1.msra.mxu0 0.0
    %2035 = vmatprep.subr.mxu0 0.0
    %2036 = vmatpush1.msra.mxu0 0.0
    %2037 = vmatprep.subr.mxu0 0.0
    %2038 = vmatpush1.msra.mxu0 0.0
    %2039 = vmatprep.subr.mxu0 0.0
    %2040 = vmatpush1.msra.mxu0 0.0
    %2041 = vmatprep.subr.mxu0 0.0
    %2042 = vmatpush1.msra.mxu0 0.0
    %2043 = vmatprep.subr.mxu0 0.0
    %2044 = vmatpush1.msra.mxu0 0.0
    %2045 = vmatprep.subr.mxu0 0.0
    %2046 = vmatpush1.msra.mxu0 0.0
    %2047 = vmatprep.subr.mxu0 0.0
    %2048 = vmatpush1.msra.mxu0 0.0
    %2049 = vmatprep.subr.mxu0 0.0
    %2050 = vmatpush1.msra.mxu0 0.0
    %2051 = vmatprep.subr.mxu0 0.0
    %2052 = vmatpush1.msra.mxu0 0.0
    %2053 = vmatprep.subr.mxu0 0.0
    %2054 = vmatpush1.msra.mxu0 0.0
    %2055 = vmatprep.mubr.f32.mxu0 0.0
    %2056 = vmatmul.mubr.f32.gmra.mrb[0].mxu0 %v1989
    %v2057 = vpop.f32.mrb[0].mxu0
    %v2058 = vadd.f32 0.0, %v2057
    %v2059 = vpop.f32.mrb[0].mxu0
    %2060 = vdwg.mxu0
    %v2062 = vsel %vm1899, %v1981, 0
    %2064 = vmatprep.subr.mxu0 0.0
    %2065 = vmatpush1.msra.mxu0 %v1204
    %2066 = vmatprep.subr.mxu0 0.0
    %2067 = vmatpush1.msra.mxu0 0.0
    %2068 = vmatprep.subr.mxu0 0.0
    %2069 = vmatpush1.msra.mxu0 0.0
    %2070 = vmatprep.subr.mxu0 0.0
    %2071 = vmatpush1.msra.mxu0 0.0
    %2072 = vmatprep.subr.mxu0 0.0
    %2073 = vmatpush1.msra.mxu0 0.0
    %2074 = vmatprep.subr.mxu0 0.0
    %2075 = vmatpush1.msra.mxu0 0.0
    %2076 = vmatprep.subr.mxu0 0.0
    %2077 = vmatpush1.msra.mxu0 0.0
    %2078 = vmatprep.subr.mxu0 0.0
    %2079 = vmatpush1.msra.mxu0 0.0
    %2080 = vmatprep.subr.mxu0 0.0
    %2081 = vmatpush1.msra.mxu0 0.0
    %2082 = vmatprep.subr.mxu0 0.0
    %2083 = vmatpush1.msra.mxu0 0.0
    %2084 = vmatprep.subr.mxu0 0.0
    %2085 = vmatpush1.msra.mxu0 0.0
    %2086 = vmatprep.subr.mxu0 0.0
    %2087 = vmatpush1.msra.mxu0 0.0
    %2088 = vmatprep.subr.mxu0 0.0
    %2089 = vmatpush1.msra.mxu0 0.0
    %2090 = vmatprep.subr.mxu0 0.0
    %2091 = vmatpush1.msra.mxu0 0.0
    %2092 = vmatprep.subr.mxu0 0.0
    %2093 = vmatpush1.msra.mxu0 0.0
    %2094 = vmatprep.subr.mxu0 0.0
    %2095 = vmatpush1.msra.mxu0 0.0
    %2096 = vmatprep.subr.mxu0 0.0
    %2097 = vmatpush1.msra.mxu0 0.0
    %2098 = vmatprep.subr.mxu0 0.0
    %2099 = vmatpush1.msra.mxu0 0.0
    %2100 = vmatprep.subr.mxu0 0.0
    %2101 = vmatpush1.msra.mxu0 0.0
    %2102 = vmatprep.subr.mxu0 0.0
    %2103 = vmatpush1.msra.mxu0 0.0
    %2104 = vmatprep.subr.mxu0 0.0
    %2105 = vmatpush1.msra.mxu0 0.0
    %2106 = vmatprep.subr.mxu0 0.0
    %2107 = vmatpush1.msra.mxu0 0.0
    %2108 = vmatprep.subr.mxu0 0.0
    %2109 = vmatpush1.msra.mxu0 0.0
    %2110 = vmatprep.subr.mxu0 0.0
    %2111 = vmatpush1.msra.mxu0 0.0
    %2112 = vmatprep.subr.mxu0 0.0
    %2113 = vmatpush1.msra.mxu0 0.0
    %2114 = vmatprep.subr.mxu0 0.0
    %2115 = vmatpush1.msra.mxu0 0.0
    %2116 = vmatprep.subr.mxu0 0.0
    %2117 = vmatpush1.msra.mxu0 0.0
    %2118 = vmatprep.subr.mxu0 0.0
    %2119 = vmatpush1.msra.mxu0 0.0
    %2120 = vmatprep.subr.mxu0 0.0
    %2121 = vmatpush1.msra.mxu0 0.0
    %2122 = vmatprep.subr.mxu0 0.0
    %2123 = vmatpush1.msra.mxu0 0.0
    %2124 = vmatprep.subr.mxu0 0.0
    %2125 = vmatpush1.msra.mxu0 0.0
    %2126 = vmatprep.subr.mxu0 0.0
    %2127 = vmatpush1.msra.mxu0 0.0
    %2128 = vmatprep.mubr.f32.mxu0 0.0
    %2129 = vmatmul.mubr.f32.gmra.mrb[0].mxu0 %v2062
    %v2130 = vpop.f32.mrb[0].mxu0
    %v2131 = vadd.f32 0.0, %v2130
    %v2132 = vpop.f32.mrb[0].mxu0
    %2133 = vdwg.mxu0
    %v2135 = vsel %vm1899, %v1982, 0
    %2137 = vmatprep.subr.mxu0 0.0
    %2138 = vmatpush1.msra.mxu0 %v1205
    %2139 = vmatprep.subr.mxu0 0.0
    %2140 = vmatpush1.msra.mxu0 0.0
    %2141 = vmatprep.subr.mxu0 0.0
    %2142 = vmatpush1.msra.mxu0 0.0
    %2143 = vmatprep.subr.mxu0 0.0
    %2144 = vmatpush1.msra.mxu0 0.0
    %2145 = vmatprep.subr.mxu0 0.0
    %2146 = vmatpush1.msra.mxu0 0.0
    %2147 = vmatprep.subr.mxu0 0.0
    %2148 = vmatpush1.msra.mxu0 0.0
    %2149 = vmatprep.subr.mxu0 0.0
    %2150 = vmatpush1.msra.mxu0 0.0
    %2151 = vmatprep.subr.mxu0 0.0
    %2152 = vmatpush1.msra.mxu0 0.0
    %2153 = vmatprep.subr.mxu0 0.0
    %2154 = vmatpush1.msra.mxu0 0.0
    %2155 = vmatprep.subr.mxu0 0.0
    %2156 = vmatpush1.msra.mxu0 0.0
    %2157 = vmatprep.subr.mxu0 0.0
    %2158 = vmatpush1.msra.mxu0 0.0
    %2159 = vmatprep.subr.mxu0 0.0
    %2160 = vmatpush1.msra.mxu0 0.0
    %2161 = vmatprep.subr.mxu0 0.0
    %2162 = vmatpush1.msra.mxu0 0.0
    %2163 = vmatprep.subr.mxu0 0.0
    %2164 = vmatpush1.msra.mxu0 0.0
    %2165 = vmatprep.subr.mxu0 0.0
    %2166 = vmatpush1.msra.mxu0 0.0
    %2167 = vmatprep.subr.mxu0 0.0
    %2168 = vmatpush1.msra.mxu0 0.0
    %2169 = vmatprep.subr.mxu0 0.0
    %2170 = vmatpush1.msra.mxu0 0.0
    %2171 = vmatprep.subr.mxu0 0.0
    %2172 = vmatpush1.msra.mxu0 0.0
    %2173 = vmatprep.subr.mxu0 0.0
    %2174 = vmatpush1.msra.mxu0 0.0
    %2175 = vmatprep.subr.mxu0 0.0
    %2176 = vmatpush1.msra.mxu0 0.0
    %2177 = vmatprep.subr.mxu0 0.0
    %2178 = vmatpush1.msra.mxu0 0.0
    %2179 = vmatprep.subr.mxu0 0.0
    %2180 = vmatpush1.msra.mxu0 0.0
    %2181 = vmatprep.subr.mxu0 0.0
    %2182 = vmatpush1.msra.mxu0 0.0
    %2183 = vmatprep.subr.mxu0 0.0
    %2184 = vmatpush1.msra.mxu0 0.0
    %2185 = vmatprep.subr.mxu0 0.0
    %2186 = vmatpush1.msra.mxu0 0.0
    %2187 = vmatprep.subr.mxu0 0.0
    %2188 = vmatpush1.msra.mxu0 0.0
    %2189 = vmatprep.subr.mxu0 0.0
    %2190 = vmatpush1.msra.mxu0 0.0
    %2191 = vmatprep.subr.mxu0 0.0
    %2192 = vmatpush1.msra.mxu0 0.0
    %2193 = vmatprep.subr.mxu0 0.0
    %2194 = vmatpush1.msra.mxu0 0.0
    %2195 = vmatprep.subr.mxu0 0.0
    %2196 = vmatpush1.msra.mxu0 0.0
    %2197 = vmatprep.subr.mxu0 0.0
    %2198 = vmatpush1.msra.mxu0 0.0
    %2199 = vmatprep.subr.mxu0 0.0
    %2200 = vmatpush1.msra.mxu0 0.0
    %2201 = vmatprep.mubr.f32.mxu0 0.0
    %2202 = vmatmul.mubr.f32.gmra.mrb[0].mxu0 %v2135
    %v2203 = vpop.f32.mrb[0].mxu0
    %v2204 = vadd.f32 0.0, %v2203
    %v2205 = vpop.f32.mrb[0].mxu0
    %2206 = vdwg.mxu0
    %v2208 = vsel %vm1899, %v1983, 0
    %2210 = vmatprep.subr.mxu0 0.0
    %2211 = vmatpush1.msra.mxu0 %v1206
    %2212 = vmatprep.subr.mxu0 0.0
    %2213 = vmatpush1.msra.mxu0 0.0
    %2214 = vmatprep.subr.mxu0 0.0
    %2215 = vmatpush1.msra.mxu0 0.0
    %2216 = vmatprep.subr.mxu0 0.0
    %2217 = vmatpush1.msra.mxu0 0.0
    %2218 = vmatprep.subr.mxu0 0.0
    %2219 = vmatpush1.msra.mxu0 0.0
    %2220 = vmatprep.subr.mxu0 0.0
    %2221 = vmatpush1.msra.mxu0 0.0
    %2222 = vmatprep.subr.mxu0 0.0
    %2223 = vmatpush1.msra.mxu0 0.0
    %2224 = vmatprep.subr.mxu0 0.0
    %2225 = vmatpush1.msra.mxu0 0.0
    %2226 = vmatprep.subr.mxu0 0.0
    %2227 = vmatpush1.msra.mxu0 0.0
    %2228 = vmatprep.subr.mxu0 0.0
    %2229 = vmatpush1.msra.mxu0 0.0
    %2230 = vmatprep.subr.mxu0 0.0
    %2231 = vmatpush1.msra.mxu0 0.0
    %2232 = vmatprep.subr.mxu0 0.0
    %2233 = vmatpush1.msra.mxu0 0.0
    %2234 = vmatprep.subr.mxu0 0.0
    %2235 = vmatpush1.msra.mxu0 0.0
    %2236 = vmatprep.subr.mxu0 0.0
    %2237 = vmatpush1.msra.mxu0 0.0
    %2238 = vmatprep.subr.mxu0 0.0
    %2239 = vmatpush1.msra.mxu0 0.0
    %2240 = vmatprep.subr.mxu0 0.0
    %2241 = vmatpush1.msra.mxu0 0.0
    %2242 = vmatprep.subr.mxu0 0.0
    %2243 = vmatpush1.msra.mxu0 0.0
    %2244 = vmatprep.subr.mxu0 0.0
    %2245 = vmatpush1.msra.mxu0 0.0
    %2246 = vmatprep.subr.mxu0 0.0
    %2247 = vmatpush1.msra.mxu0 0.0
    %2248 = vmatprep.subr.mxu0 0.0
    %2249 = vmatpush1.msra.mxu0 0.0
    %2250 = vmatprep.subr.mxu0 0.0
    %2251 = vmatpush1.msra.mxu0 0.0
    %2252 = vmatprep.subr.mxu0 0.0
    %2253 = vmatpush1.msra.mxu0 0.0
    %2254 = vmatprep.subr.mxu0 0.0
    %2255 = vmatpush1.msra.mxu0 0.0
    %2256 = vmatprep.subr.mxu0 0.0
    %2257 = vmatpush1.msra.mxu0 0.0
    %2258 = vmatprep.subr.mxu0 0.0
    %2259 = vmatpush1.msra.mxu0 0.0
    %2260 = vmatprep.subr.mxu0 0.0
    %2261 = vmatpush1.msra.mxu0 0.0
    %2262 = vmatprep.subr.mxu0 0.0
    %2263 = vmatpush1.msra.mxu0 0.0
    %2264 = vmatprep.subr.mxu0 0.0
    %2265 = vmatpush1.msra.mxu0 0.0
    %2266 = vmatprep.subr.mxu0 0.0
    %2267 = vmatpush1.msra.mxu0 0.0
    %2268 = vmatprep.subr.mxu0 0.0
    %2269 = vmatpush1.msra.mxu0 0.0
    %2270 = vmatprep.subr.mxu0 0.0
    %2271 = vmatpush1.msra.mxu0 0.0
    %2272 = vmatprep.subr.mxu0 0.0
    %2273 = vmatpush1.msra.mxu0 0.0
    %2274 = vmatprep.mubr.f32.mxu0 0.0
    %2275 = vmatmul.mubr.f32.gmra.mrb[0].mxu0 %v2208
    %v2276 = vpop.f32.mrb[0].mxu0
    %v2277 = vadd.f32 0.0, %v2276
    %v2278 = vpop.f32.mrb[0].mxu0
    %2279 = vdwg.mxu0
    %v2281 = vsel %vm1899, %v1984, 0
    %2283 = vmatprep.subr.mxu0 0.0
    %2284 = vmatpush1.msra.mxu0 %v1271
    %2285 = vmatprep.subr.mxu0 0.0
    %2286 = vmatpush1.msra.mxu0 0.0
    %2287 = vmatprep.subr.mxu0 0.0
    %2288 = vmatpush1.msra.mxu0 0.0
    %2289 = vmatprep.subr.mxu0 0.0
    %2290 = vmatpush1.msra.mxu0 0.0
    %2291 = vmatprep.subr.mxu0 0.0
    %2292 = vmatpush1.msra.mxu0 0.0
    %2293 = vmatprep.subr.mxu0 0.0
    %2294 = vmatpush1.msra.mxu0 0.0
    %2295 = vmatprep.subr.mxu0 0.0
    %2296 = vmatpush1.msra.mxu0 0.0
    %2297 = vmatprep.subr.mxu0 0.0
    %2298 = vmatpush1.msra.mxu0 0.0
    %2299 = vmatprep.subr.mxu0 0.0
    %2300 = vmatpush1.msra.mxu0 0.0
    %2301 = vmatprep.subr.mxu0 0.0
    %2302 = vmatpush1.msra.mxu0 0.0
    %2303 = vmatprep.subr.mxu0 0.0
    %2304 = vmatpush1.msra.mxu0 0.0
    %2305 = vmatprep.subr.mxu0 0.0
    %2306 = vmatpush1.msra.mxu0 0.0
    %2307 = vmatprep.subr.mxu0 0.0
    %2308 = vmatpush1.msra.mxu0 0.0
    %2309 = vmatprep.subr.mxu0 0.0
    %2310 = vmatpush1.msra.mxu0 0.0
    %2311 = vmatprep.subr.mxu0 0.0
    %2312 = vmatpush1.msra.mxu0 0.0
    %2313 = vmatprep.subr.mxu0 0.0
    %2314 = vmatpush1.msra.mxu0 0.0
    %2315 = vmatprep.subr.mxu0 0.0
    %2316 = vmatpush1.msra.mxu0 0.0
    %2317 = vmatprep.subr.mxu0 0.0
    %2318 = vmatpush1.msra.mxu0 0.0
    %2319 = vmatprep.subr.mxu0 0.0
    %2320 = vmatpush1.msra.mxu0 0.0
    %2321 = vmatprep.subr.mxu0 0.0
    %2322 = vmatpush1.msra.mxu0 0.0
    %2323 = vmatprep.subr.mxu0 0.0
    %2324 = vmatpush1.msra.mxu0 0.0
    %2325 = vmatprep.subr.mxu0 0.0
    %2326 = vmatpush1.msra.mxu0 0.0
    %2327 = vmatprep.subr.mxu0 0.0
    %2328 = vmatpush1.msra.mxu0 0.0
    %2329 = vmatprep.subr.mxu0 0.0
    %2330 = vmatpush1.msra.mxu0 0.0
    %2331 = vmatprep.subr.mxu0 0.0
    %2332 = vmatpush1.msra.mxu0 0.0
    %2333 = vmatprep.subr.mxu0 0.0
    %2334 = vmatpush1.msra.mxu0 0.0
    %2335 = vmatprep.subr.mxu0 0.0
    %2336 = vmatpush1.msra.mxu0 0.0
    %2337 = vmatprep.subr.mxu0 0.0
    %2338 = vmatpush1.msra.mxu0 0.0
    %2339 = vmatprep.subr.mxu0 0.0
    %2340 = vmatpush1.msra.mxu0 0.0
    %2341 = vmatprep.subr.mxu0 0.0
    %2342 = vmatpush1.msra.mxu0 0.0
    %2343 = vmatprep.subr.mxu0 0.0
    %2344 = vmatpush1.msra.mxu0 0.0
    %2345 = vmatprep.subr.mxu0 0.0
    %2346 = vmatpush1.msra.mxu0 0.0
    %2347 = vmatprep.mubr.f32.mxu0 0.0
    %2348 = vmatmul.mubr.f32.gmra.mrb[0].mxu0 %v2281
    %v2349 = vpop.f32.mrb[0].mxu0
    %v2350 = vadd.f32 0.0, %v2349
    %v2351 = vpop.f32.mrb[0].mxu0
    %2352 = vdwg.mxu0
    %v2354 = vsel %vm1899, %v1985, 0
    %2356 = vmatprep.subr.mxu0 0.0
    %2357 = vmatpush1.msra.mxu0 %v1272
    %2358 = vmatprep.subr.mxu0 0.0
    %2359 = vmatpush1.msra.mxu0 0.0
    %2360 = vmatprep.subr.mxu0 0.0
    %2361 = vmatpush1.msra.mxu0 0.0
    %2362 = vmatprep.subr.mxu0 0.0
    %2363 = vmatpush1.msra.mxu0 0.0
    %2364 = vmatprep.subr.mxu0 0.0
    %2365 = vmatpush1.msra.mxu0 0.0
    %2366 = vmatprep.subr.mxu0 0.0
    %2367 = vmatpush1.msra.mxu0 0.0
    %2368 = vmatprep.subr.mxu0 0.0
    %2369 = vmatpush1.msra.mxu0 0.0
    %2370 = vmatprep.subr.mxu0 0.0
    %2371 = vmatpush1.msra.mxu0 0.0
    %2372 = vmatprep.subr.mxu0 0.0
    %2373 = vmatpush1.msra.mxu0 0.0
    %2374 = vmatprep.subr.mxu0 0.0
    %2375 = vmatpush1.msra.mxu0 0.0
    %2376 = vmatprep.subr.mxu0 0.0
    %2377 = vmatpush1.msra.mxu0 0.0
    %2378 = vmatprep.subr.mxu0 0.0
    %2379 = vmatpush1.msra.mxu0 0.0
    %2380 = vmatprep.subr.mxu0 0.0
    %2381 = vmatpush1.msra.mxu0 0.0
    %2382 = vmatprep.subr.mxu0 0.0
    %2383 = vmatpush1.msra.mxu0 0.0
    %2384 = vmatprep.subr.mxu0 0.0
    %2385 = vmatpush1.msra.mxu0 0.0
    %2386 = vmatprep.subr.mxu0 0.0
    %2387 = vmatpush1.msra.mxu0 0.0
    %2388 = vmatprep.subr.mxu0 0.0
    %2389 = vmatpush1.msra.mxu0 0.0
    %2390 = vmatprep.subr.mxu0 0.0
    %2391 = vmatpush1.msra.mxu0 0.0
    %2392 = vmatprep.subr.mxu0 0.0
    %2393 = vmatpush1.msra.mxu0 0.0
    %2394 = vmatprep.subr.mxu0 0.0
    %2395 = vmatpush1.msra.mxu0 0.0
    %2396 = vmatprep.subr.mxu0 0.0
    %2397 = vmatpush1.msra.mxu0 0.0
    %2398 = vmatprep.subr.mxu0 0.0
    %2399 = vmatpush1.msra.mxu0 0.0
    %2400 = vmatprep.subr.mxu0 0.0
    %2401 = vmatpush1.msra.mxu0 0.0
    %2402 = vmatprep.subr.mxu0 0.0
    %2403 = vmatpush1.msra.mxu0 0.0
    %2404 = vmatprep.subr.mxu0 0.0
    %2405 = vmatpush1.msra.mxu0 0.0
    %2406 = vmatprep.subr.mxu0 0.0
    %2407 = vmatpush1.msra.mxu0 0.0
    %2408 = vmatprep.subr.mxu0 0.0
    %2409 = vmatpush1.msra.mxu0 0.0
    %2410 = vmatprep.subr.mxu0 0.0
    %2411 = vmatpush1.msra.mxu0 0.0
    %2412 = vmatprep.subr.mxu0 0.0
    %2413 = vmatpush1.msra.mxu0 0.0
    %2414 = vmatprep.subr.mxu0 0.0
    %2415 = vmatpush1.msra.mxu0 0.0
    %2416 = vmatprep.subr.mxu0 0.0
    %2417 = vmatpush1.msra.mxu0 0.0
    %2418 = vmatprep.subr.mxu0 0.0
    %2419 = vmatpush1.msra.mxu0 0.0
    %2420 = vmatprep.mubr.f32.mxu0 0.0
    %2421 = vmatmul.mubr.f32.gmra.mrb[0].mxu0 %v2354
    %v2422 = vpop.f32.mrb[0].mxu0
    %v2423 = vadd.f32 0.0, %v2422
    %v2424 = vpop.f32.mrb[0].mxu0
    %2425 = vdwg.mxu0
    %v2427 = vsel %vm1899, %v1986, 0
    %2429 = vmatprep.subr.mxu0 0.0
    %2430 = vmatpush1.msra.mxu0 %v1273
    %2431 = vmatprep.subr.mxu0 0.0
    %2432 = vmatpush1.msra.mxu0 0.0
    %2433 = vmatprep.subr.mxu0 0.0
    %2434 = vmatpush1.msra.mxu0 0.0
    %2435 = vmatprep.subr.mxu0 0.0
    %2436 = vmatpush1.msra.mxu0 0.0
    %2437 = vmatprep.subr.mxu0 0.0
    %2438 = vmatpush1.msra.mxu0 0.0
    %2439 = vmatprep.subr.mxu0 0.0
    %2440 = vmatpush1.msra.mxu0 0.0
    %2441 = vmatprep.subr.mxu0 0.0
    %2442 = vmatpush1.msra.mxu0 0.0
    %2443 = vmatprep.subr.mxu0 0.0
    %2444 = vmatpush1.msra.mxu0 0.0
    %2445 = vmatprep.subr.mxu0 0.0
    %2446 = vmatpush1.msra.mxu0 0.0
    %2447 = vmatprep.subr.mxu0 0.0
    %2448 = vmatpush1.msra.mxu0 0.0
    %2449 = vmatprep.subr.mxu0 0.0
    %2450 = vmatpush1.msra.mxu0 0.0
    %2451 = vmatprep.subr.mxu0 0.0
    %2452 = vmatpush1.msra.mxu0 0.0
    %2453 = vmatprep.subr.mxu0 0.0
    %2454 = vmatpush1.msra.mxu0 0.0
    %2455 = vmatprep.subr.mxu0 0.0
    %2456 = vmatpush1.msra.mxu0 0.0
    %2457 = vmatprep.subr.mxu0 0.0
    %2458 = vmatpush1.msra.mxu0 0.0
    %2459 = vmatprep.subr.mxu0 0.0
    %2460 = vmatpush1.msra.mxu0 0.0
    %2461 = vmatprep.subr.mxu0 0.0
    %2462 = vmatpush1.msra.mxu0 0.0
    %2463 = vmatprep.subr.mxu0 0.0
    %2464 = vmatpush1.msra.mxu0 0.0
    %2465 = vmatprep.subr.mxu0 0.0
    %2466 = vmatpush1.msra.mxu0 0.0
    %2467 = vmatprep.subr.mxu0 0.0
    %2468 = vmatpush1.msra.mxu0 0.0
    %2469 = vmatprep.subr.mxu0 0.0
    %2470 = vmatpush1.msra.mxu0 0.0
    %2471 = vmatprep.subr.mxu0 0.0
    %2472 = vmatpush1.msra.mxu0 0.0
    %2473 = vmatprep.subr.mxu0 0.0
    %2474 = vmatpush1.msra.mxu0 0.0
    %2475 = vmatprep.subr.mxu0 0.0
    %2476 = vmatpush1.msra.mxu0 0.0
    %2477 = vmatprep.subr.mxu0 0.0
    %2478 = vmatpush1.msra.mxu0 0.0
    %2479 = vmatprep.subr.mxu0 0.0
    %2480 = vmatpush1.msra.mxu0 0.0
    %2481 = vmatprep.subr.mxu0 0.0
    %2482 = vmatpush1.msra.mxu0 0.0
    %2483 = vmatprep.subr.mxu0 0.0
    %2484 = vmatpush1.msra.mxu0 0.0
    %2485 = vmatprep.subr.mxu0 0.0
    %2486 = vmatpush1.msra.mxu0 0.0
    %2487 = vmatprep.subr.mxu0 0.0
    %2488 = vmatpush1.msra.mxu0 0.0
    %2489 = vmatprep.subr.mxu0 0.0
    %2490 = vmatpush1.msra.mxu0 0.0
    %2491 = vmatprep.subr.mxu0 0.0
    %2492 = vmatpush1.msra.mxu0 0.0
    %2493 = vmatprep.mubr.f32.mxu0 0.0
    %2494 = vmatmul.mubr.f32.gmra.mrb[0].mxu0 %v2427
    %v2495 = vpop.f32.mrb[0].mxu0
    %v2496 = vadd.f32 0.0, %v2495
    %v2497 = vpop.f32.mrb[0].mxu0
    %2498 = vdwg.mxu0
    %v2500 = vsel %vm1899, %v1987, 0
    %2502 = vmatprep.subr.mxu0 0.0
    %2503 = vmatpush1.msra.mxu0 %v1274
    %2504 = vmatprep.subr.mxu0 0.0
    %2505 = vmatpush1.msra.mxu0 0.0
    %2506 = vmatprep.subr.mxu0 0.0
    %2507 = vmatpush1.msra.mxu0 0.0
    %2508 = vmatprep.subr.mxu0 0.0
    %2509 = vmatpush1.msra.mxu0 0.0
    %2510 = vmatprep.subr.mxu0 0.0
    %2511 = vmatpush1.msra.mxu0 0.0
    %2512 = vmatprep.subr.mxu0 0.0
    %2513 = vmatpush1.msra.mxu0 0.0
    %2514 = vmatprep.subr.mxu0 0.0
    %2515 = vmatpush1.msra.mxu0 0.0
    %2516 = vmatprep.subr.mxu0 0.0
    %2517 = vmatpush1.msra.mxu0 0.0
    %2518 = vmatprep.subr.mxu0 0.0
    %2519 = vmatpush1.msra.mxu0 0.0
    %2520 = vmatprep.subr.mxu0 0.0
    %2521 = vmatpush1.msra.mxu0 0.0
    %2522 = vmatprep.subr.mxu0 0.0
    %2523 = vmatpush1.msra.mxu0 0.0
    %2524 = vmatprep.subr.mxu0 0.0
    %2525 = vmatpush1.msra.mxu0 0.0
    %2526 = vmatprep.subr.mxu0 0.0
    %2527 = vmatpush1.msra.mxu0 0.0
    %2528 = vmatprep.subr.mxu0 0.0
    %2529 = vmatpush1.msra.mxu0 0.0
    %2530 = vmatprep.subr.mxu0 0.0
    %2531 = vmatpush1.msra.mxu0 0.0
    %2532 = vmatprep.subr.mxu0 0.0
    %2533 = vmatpush1.msra.mxu0 0.0
    %2534 = vmatprep.subr.mxu0 0.0
    %2535 = vmatpush1.msra.mxu0 0.0
    %2536 = vmatprep.subr.mxu0 0.0
    %2537 = vmatpush1.msra.mxu0 0.0
    %2538 = vmatprep.subr.mxu0 0.0
    %2539 = vmatpush1.msra.mxu0 0.0
    %2540 = vmatprep.subr.mxu0 0.0
    %2541 = vmatpush1.msra.mxu0 0.0
    %2542 = vmatprep.subr.mxu0 0.0
    %2543 = vmatpush1.msra.mxu0 0.0
    %2544 = vmatprep.subr.mxu0 0.0
    %2545 = vmatpush1.msra.mxu0 0.0
    %2546 = vmatprep.subr.mxu0 0.0
    %2547 = vmatpush1.msra.mxu0 0.0
    %2548 = vmatprep.subr.mxu0 0.0
    %2549 = vmatpush1.msra.mxu0 0.0
    %2550 = vmatprep.subr.mxu0 0.0
    %2551 = vmatpush1.msra.mxu0 0.0
    %2552 = vmatprep.subr.mxu0 0.0
    %2553 = vmatpush1.msra.mxu0 0.0
    %2554 = vmatprep.subr.mxu0 0.0
    %2555 = vmatpush1.msra.mxu0 0.0
    %2556 = vmatprep.subr.mxu0 0.0
    %2557 = vmatpush1.msra.mxu0 0.0
    %2558 = vmatprep.subr.mxu0 0.0
    %2559 = vmatpush1.msra.mxu0 0.0
    %2560 = vmatprep.subr.mxu0 0.0
    %2561 = vmatpush1.msra.mxu0 0.0
    %2562 = vmatprep.subr.mxu0 0.0
    %2563 = vmatpush1.msra.mxu0 0.0
    %2564 = vmatprep.subr.mxu0 0.0
    %2565 = vmatpush1.msra.mxu0 0.0
    %2566 = vmatprep.mubr.f32.mxu0 0.0
    %2567 = vmatmul.mubr.f32.gmra.mrb[0].mxu0 %v2500
    %v2568 = vpop.f32.mrb[0].mxu0
    %v2569 = vadd.f32 0.0, %v2568
    %v2570 = vpop.f32.mrb[0].mxu0
    %2571 = vdwg.mxu0
    %v2572 = vcombine.low %v2058, %v2204
    %v2573 = vcombine.high %v2058, %v2204
    %v2575 = vunpack.c.l.s4 1983009808
    %v2576 = vunpack.c.0.s8 %v2575
    %v2577 = vlaneseq
    %v2578 = vshrl.u32 %v2577, 7
    %v2579 = vsub.s32 %v2576, %v2578
    %v2580 = vrot.slane %v2572, %v2579
    %v2582 = vunpack.c.l.s4 1983009808
    %v2583 = vunpack.c.0.s8 %v2582
    %v2584 = vlaneseq
    %v2585 = vshrl.u32 %v2584, 7
    %v2586 = vsub.s32 %v2583, %v2585
    %v2587 = vrot.slane %v2573, %v2586
    %v2588 = vcombine.low %v2131, %v2277
    %v2589 = vcombine.high %v2131, %v2277
    %v2591 = vunpack.c.l.s4 1983009808
    %v2592 = vunpack.c.0.s8 %v2591
    %v2593 = vlaneseq
    %v2594 = vshrl.u32 %v2593, 7
    %v2595 = vsub.s32 %v2592, %v2594
    %v2596 = vrot.slane %v2588, %v2595
    %v2598 = vunpack.c.l.s4 1983009808
    %v2599 = vunpack.c.0.s8 %v2598
    %v2600 = vlaneseq
    %v2601 = vshrl.u32 %v2600, 7
    %v2602 = vsub.s32 %v2599, %v2601
    %v2603 = vrot.slane %v2589, %v2602
    %v2604 = vcombine.low %v2580, %v2596
    %v2605 = vcombine.high %v2580, %v2596
    %v2607 = vunpack.c.l.s4 1934713408
    %v2608 = vunpack.c.0.s8 %v2607
    %v2609 = vlaneseq
    %v2610 = vshrl.u32 %v2609, 7
    %v2611 = vsub.s32 %v2608, %v2610
    %v2612 = vrot.slane %v2604, %v2611
    %v2614 = vunpack.c.l.s4 1934713408
    %v2615 = vunpack.c.0.s8 %v2614
    %v2616 = vlaneseq
    %v2617 = vshrl.u32 %v2616, 7
    %v2618 = vsub.s32 %v2615, %v2617
    %v2619 = vrot.slane %v2605, %v2618
    %v2620 = vcombine.low %v2587, %v2603
    %v2621 = vcombine.high %v2587, %v2603
    %v2623 = vunpack.c.l.s4 1934713408
    %v2624 = vunpack.c.0.s8 %v2623
    %v2625 = vlaneseq
    %v2626 = vshrl.u32 %v2625, 7
    %v2627 = vsub.s32 %v2624, %v2626
    %v2628 = vrot.slane %v2620, %v2627
    %v2630 = vunpack.c.l.s4 1934713408
    %v2631 = vunpack.c.0.s8 %v2630
    %v2632 = vlaneseq
    %v2633 = vshrl.u32 %v2632, 7
    %v2634 = vsub.s32 %v2631, %v2633
    %v2635 = vrot.slane %v2621, %v2634
    %v2636 = vcombine.high %v2612, 0.0
    %v2637 = vcombine.high %v2619, 0.0
    %v2638 = vcombine.high %v2628, 0.0
    %v2639 = vcombine.high %v2635, 0.0
    %v2640 = vcombine.low %v2350, %v2496
    %v2641 = vcombine.high %v2350, %v2496
    %v2643 = vunpack.c.l.s4 1983009808
    %v2644 = vunpack.c.0.s8 %v2643
    %v2645 = vlaneseq
    %v2646 = vshrl.u32 %v2645, 7
    %v2647 = vsub.s32 %v2644, %v2646
    %v2648 = vrot.slane %v2640, %v2647
    %v2650 = vunpack.c.l.s4 1983009808
    %v2651 = vunpack.c.0.s8 %v2650
    %v2652 = vlaneseq
    %v2653 = vshrl.u32 %v2652, 7
    %v2654 = vsub.s32 %v2651, %v2653
    %v2655 = vrot.slane %v2641, %v2654
    %v2656 = vcombine.low %v2423, %v2569
    %v2657 = vcombine.high %v2423, %v2569
    %v2659 = vunpack.c.l.s4 1983009808
    %v2660 = vunpack.c.0.s8 %v2659
    %v2661 = vlaneseq
    %v2662 = vshrl.u32 %v2661, 7
    %v2663 = vsub.s32 %v2660, %v2662
    %v2664 = vrot.slane %v2656, %v2663
    %v2666 = vunpack.c.l.s4 1983009808
    %v2667 = vunpack.c.0.s8 %v2666
    %v2668 = vlaneseq
    %v2669 = vshrl.u32 %v2668, 7
    %v2670 = vsub.s32 %v2667, %v2669
    %v2671 = vrot.slane %v2657, %v2670
    %v2672 = vcombine.low %v2648, %v2664
    %v2673 = vcombine.high %v2648, %v2664
    %v2675 = vunpack.c.l.s4 1934713408
    %v2676 = vunpack.c.0.s8 %v2675
    %v2677 = vlaneseq
    %v2678 = vshrl.u32 %v2677, 7
    %v2679 = vsub.s32 %v2676, %v2678
    %v2680 = vrot.slane %v2672, %v2679
    %v2682 = vunpack.c.l.s4 1934713408
    %v2683 = vunpack.c.0.s8 %v2682
    %v2684 = vlaneseq
    %v2685 = vshrl.u32 %v2684, 7
    %v2686 = vsub.s32 %v2683, %v2685
    %v2687 = vrot.slane %v2673, %v2686
    %v2688 = vcombine.low %v2655, %v2671
    %v2689 = vcombine.high %v2655, %v2671
    %v2691 = vunpack.c.l.s4 1934713408
    %v2692 = vunpack.c.0.s8 %v2691
    %v2693 = vlaneseq
    %v2694 = vshrl.u32 %v2693, 7
    %v2695 = vsub.s32 %v2692, %v2694
    %v2696 = vrot.slane %v2688, %v2695
    %v2698 = vunpack.c.l.s4 1934713408
    %v2699 = vunpack.c.0.s8 %v2698
    %v2700 = vlaneseq
    %v2701 = vshrl.u32 %v2700, 7
    %v2702 = vsub.s32 %v2699, %v2701
    %v2703 = vrot.slane %v2689, %v2702
    %v2704 = vcombine.high %v2680, 0.0
    %v2705 = vcombine.high %v2687, 0.0
    %v2706 = vcombine.high %v2696, 0.0
    %v2707 = vcombine.high %v2703, 0.0
    %v2708 = vcombine.low %v2612, %v2619
    %v2710 = vunpack.c.l.s4 1983009808
    %v2711 = vunpack.c.0.s8 %v2710
    %v2712 = vlaneseq
    %v2713 = vshrl.u32 %v2712, 7
    %v2714 = vsub.s32 %v2711, %v2713
    %v2715 = vrot.slane %v2708, %v2714
    %v2716 = vcombine.low %v2636, %v2637
    %v2718 = vunpack.c.l.s4 1983009808
    %v2719 = vunpack.c.0.s8 %v2718
    %v2720 = vlaneseq
    %v2721 = vshrl.u32 %v2720, 7
    %v2722 = vsub.s32 %v2719, %v2721
    %v2723 = vrot.slane %v2716, %v2722
    %v2724 = vcombine.low %v2628, %v2635
    %v2726 = vunpack.c.l.s4 1983009808
    %v2727 = vunpack.c.0.s8 %v2726
    %v2728 = vlaneseq
    %v2729 = vshrl.u32 %v2728, 7
    %v2730 = vsub.s32 %v2727, %v2729
    %v2731 = vrot.slane %v2724, %v2730
    %v2732 = vcombine.low %v2638, %v2639
    %v2734 = vunpack.c.l.s4 1983009808
    %v2735 = vunpack.c.0.s8 %v2734
    %v2736 = vlaneseq
    %v2737 = vshrl.u32 %v2736, 7
    %v2738 = vsub.s32 %v2735, %v2737
    %v2739 = vrot.slane %v2732, %v2738
    %v2740 = vcombine.low %v2715, %v2723
    %v2741 = vcombine.high %v2715, %v2723
    %v2743 = vunpack.c.l.s4 1934713408
    %v2744 = vunpack.c.0.s8 %v2743
    %v2745 = vlaneseq
    %v2746 = vshrl.u32 %v2745, 7
    %v2747 = vsub.s32 %v2744, %v2746
    %v2748 = vrot.slane %v2740, %v2747
    %v2750 = vunpack.c.l.s4 1934713408
    %v2751 = vunpack.c.0.s8 %v2750
    %v2752 = vlaneseq
    %v2753 = vshrl.u32 %v2752, 7
    %v2754 = vsub.s32 %v2751, %v2753
    %v2755 = vrot.slane %v2741, %v2754
    %v2756 = vcombine.low %v2731, %v2739
    %v2757 = vcombine.high %v2731, %v2739
    %v2759 = vunpack.c.l.s4 1934713408
    %v2760 = vunpack.c.0.s8 %v2759
    %v2761 = vlaneseq
    %v2762 = vshrl.u32 %v2761, 7
    %v2763 = vsub.s32 %v2760, %v2762
    %v2764 = vrot.slane %v2756, %v2763
    %v2766 = vunpack.c.l.s4 1934713408
    %v2767 = vunpack.c.0.s8 %v2766
    %v2768 = vlaneseq
    %v2769 = vshrl.u32 %v2768, 7
    %v2770 = vsub.s32 %v2767, %v2769
    %v2771 = vrot.slane %v2757, %v2770
    %v2772 = vcombine.low %v2748, %v2764
    %v2773 = vcombine.high %v2748, %v2764
    %v2774 = vcombine.low %v2755, %v2771
    %v2775 = vcombine.high %v2755, %v2771
    %v2776 = vcombine.low %v2680, %v2687
    %v2778 = vunpack.c.l.s4 1983009808
    %v2779 = vunpack.c.0.s8 %v2778
    %v2780 = vlaneseq
    %v2781 = vshrl.u32 %v2780, 7
    %v2782 = vsub.s32 %v2779, %v2781
    %v2783 = vrot.slane %v2776, %v2782
    %v2784 = vcombine.low %v2704, %v2705
    %v2786 = vunpack.c.l.s4 1983009808
    %v2787 = vunpack.c.0.s8 %v2786
    %v2788 = vlaneseq
    %v2789 = vshrl.u32 %v2788, 7
    %v2790 = vsub.s32 %v2787, %v2789
    %v2791 = vrot.slane %v2784, %v2790
    %v2792 = vcombine.low %v2696, %v2703
    %v2794 = vunpack.c.l.s4 1983009808
    %v2795 = vunpack.c.0.s8 %v2794
    %v2796 = vlaneseq
    %v2797 = vshrl.u32 %v2796, 7
    %v2798 = vsub.s32 %v2795, %v2797
    %v2799 = vrot.slane %v2792, %v2798
    %v2800 = vcombine.low %v2706, %v2707
    %v2802 = vunpack.c.l.s4 1983009808
    %v2803 = vunpack.c.0.s8 %v2802
    %v2804 = vlaneseq
    %v2805 = vshrl.u32 %v2804, 7
    %v2806 = vsub.s32 %v2803, %v2805
    %v2807 = vrot.slane %v2800, %v2806
    %v2808 = vcombine.low %v2783, %v2791
    %v2809 = vcombine.high %v2783, %v2791
    %v2811 = vunpack.c.l.s4 1934713408
    %v2812 = vunpack.c.0.s8 %v2811
    %v2813 = vlaneseq
    %v2814 = vshrl.u32 %v2813, 7
    %v2815 = vsub.s32 %v2812, %v2814
    %v2816 = vrot.slane %v2808, %v2815
    %v2818 = vunpack.c.l.s4 1934713408
    %v2819 = vunpack.c.0.s8 %v2818
    %v2820 = vlaneseq
    %v2821 = vshrl.u32 %v2820, 7
    %v2822 = vsub.s32 %v2819, %v2821
    %v2823 = vrot.slane %v2809, %v2822
    %v2824 = vcombine.low %v2799, %v2807
    %v2825 = vcombine.high %v2799, %v2807
    %v2827 = vunpack.c.l.s4 1934713408
    %v2828 = vunpack.c.0.s8 %v2827
    %v2829 = vlaneseq
    %v2830 = vshrl.u32 %v2829, 7
    %v2831 = vsub.s32 %v2828, %v2830
    %v2832 = vrot.slane %v2824, %v2831
    %v2834 = vunpack.c.l.s4 1934713408
    %v2835 = vunpack.c.0.s8 %v2834
    %v2836 = vlaneseq
    %v2837 = vshrl.u32 %v2836, 7
    %v2838 = vsub.s32 %v2835, %v2837
    %v2839 = vrot.slane %v2825, %v2838
    %v2840 = vcombine.low %v2816, %v2832
    %v2841 = vcombine.high %v2816, %v2832
    %v2842 = vcombine.low %v2823, %v2839
    %v2843 = vcombine.high %v2823, %v2839
    %2846 = vrot.lane.b32.xlu0 %v2773, 32
    %v2847 = vpop.permute.xlu0 %2846
    %2848 = vrot.lane.b32.xlu0 %v2841, 32
    %v2849 = vpop.permute.xlu0 %2848
    %2854 = vrot.lane.b32.xlu0 %v2774, 64
    %v2855 = vpop.permute.xlu0 %2854
    %2856 = vrot.lane.b32.xlu0 %v2842, 64
    %v2857 = vpop.permute.xlu0 %2856
    %2862 = vrot.lane.b32.xlu0 %v2775, 96
    %v2863 = vpop.permute.xlu0 %2862
    %2864 = vrot.lane.b32.xlu0 %v2843, 96
    %v2865 = vpop.permute.xlu0 %2864
    %v2868 = vsel %vm1275, %v2772, %v2847
    %v2869 = vsel %vm1275, %v2840, %v2849
    %vm2870 = vcmask 523264
    %v2871 = vsel %vm2870, %v2868, %v2855
    %v2872 = vsel %vm2870, %v2869, %v2857
    %vm2873 = vcmask 785408
    %v2874 = vsel %vm2873, %v2871, %v2863
    %v2875 = vsel %vm2873, %v2872, %v2865
    %v2876 = vpack.c.bf16 %v2875, %v2874
    %v2877 = vld [vmem:[#allocation7] sm:$0xf]
    %v2878 = vld [vmem:[#allocation7 + $0x4] sm:$0xf]
    %v2879 = vld [vmem:[#allocation7 + $0x8] sm:$0xf]
    %v2880 = vld [vmem:[#allocation7 + $0xc] sm:$0xf]
    %v2881 = vld [vmem:[#allocation7 + $0x10] sm:$0xf]
    %v2882 = vld [vmem:[#allocation7 + $0x14] sm:$0xf]
    %v2883 = vld [vmem:[#allocation7 + $0x18] sm:$0xf]
    %v2884 = vld [vmem:[#allocation7 + $0x1c] sm:$0xf]
    %v2885 = vld [vmem:[#allocation7 + $0x20] sm:$0xf]
    %v2886 = vld [vmem:[#allocation7 + $0x24] sm:$0xf]
    %v2887 = vld [vmem:[#allocation7 + $0x28] sm:$0xf]
    %v2888 = vld [vmem:[#allocation7 + $0x2c] sm:$0xf]
    %v2889 = vld [vmem:[#allocation7 + $0x30] sm:$0xf]
    %v2890 = vld [vmem:[#allocation7 + $0x34] sm:$0xf]
    %v2891 = vld [vmem:[#allocation7 + $0x38] sm:$0xf]
    %v2892 = vld [vmem:[#allocation7 + $0x3c] sm:$0xf]
    %v2893 = vld [vmem:[%s6] sm:$0x1]
    %v2895 = vlaneseq
    %v2896 = vshrl.u32 %v2895, 7
    %v2897 = vsub.s32 0, %v2896
    %v2898 = vrot.slane %v2893, %v2897
    %v2916 = vunpack.c.l.b16 %v2877
    %v2917 = vunpack.c.l.b16 %v2878
    %v2918 = vunpack.c.l.b16 %v2879
    %v2919 = vunpack.c.l.b16 %v2880
    %v2920 = vunpack.c.l.b16 %v2881
    %v2921 = vunpack.c.l.b16 %v2882
    %v2922 = vunpack.c.l.b16 %v2883
    %v2923 = vunpack.c.l.b16 %v2884
    %v2924 = vunpack.c.l.b16 %v2885
    %v2925 = vunpack.c.l.b16 %v2886
    %v2926 = vunpack.c.l.b16 %v2887
    %v2927 = vunpack.c.l.b16 %v2888
    %v2928 = vunpack.c.l.b16 %v2889
    %v2929 = vunpack.c.l.b16 %v2890
    %v2930 = vunpack.c.l.b16 %v2891
    %v2931 = vunpack.c.l.b16 %v2892
    %v2932 = vpack.c.b16 %v2917, %v2916
    %v2933 = vpack.c.b16 %v2919, %v2918
    %v2934 = vpack.c.b16 %v2921, %v2920
    %v2935 = vpack.c.b16 %v2923, %v2922
    %v2936 = vpack.c.b16 %v2925, %v2924
    %v2937 = vpack.c.b16 %v2927, %v2926
    %v2938 = vpack.c.b16 %v2929, %v2928
    %v2939 = vpack.c.b16 %v2931, %v2930
    %2948 = vmatprep.subr.bf16.mxu0 0
    %2949 = vmatpush1.bf16.msra.mxu0 %v2932
    %2950 = vmatprep.subr.bf16.mxu0 0
    %2951 = vmatpush1.bf16.msra.mxu0 %v2933
    %2952 = vmatprep.subr.bf16.mxu0 0
    %2953 = vmatpush1.bf16.msra.mxu0 %v2934
    %2954 = vmatprep.subr.bf16.mxu0 0
    %2955 = vmatpush1.bf16.msra.mxu0 %v2935
    %2956 = vmatprep.subr.bf16.mxu0 0
    %2957 = vmatpush1.bf16.msra.mxu0 %v2936
    %2958 = vmatprep.subr.bf16.mxu0 0
    %2959 = vmatpush1.bf16.msra.mxu0 %v2937
    %2960 = vmatprep.subr.bf16.mxu0 0
    %2961 = vmatpush1.bf16.msra.mxu0 %v2938
    %2962 = vmatprep.subr.bf16.mxu0 0
    %2963 = vmatpush1.bf16.msra.mxu0 %v2939
    %2964 = vmatprep.subr.bf16.mxu0 0
    %2965 = vmatpush1.bf16.msra.mxu0 0
    %2966 = vmatprep.subr.bf16.mxu0 0
    %2967 = vmatpush1.bf16.msra.mxu0 0
    %2968 = vmatprep.subr.bf16.mxu0 0
    %2969 = vmatpush1.bf16.msra.mxu0 0
    %2970 = vmatprep.subr.bf16.mxu0 0
    %2971 = vmatpush1.bf16.msra.mxu0 0
    %2972 = vmatprep.subr.bf16.mxu0 0
    %2973 = vmatpush1.bf16.msra.mxu0 0
    %2974 = vmatprep.subr.bf16.mxu0 0
    %2975 = vmatpush1.bf16.msra.mxu0 0
    %2976 = vmatprep.subr.bf16.mxu0 0
    %2977 = vmatpush1.bf16.msra.mxu0 0
    %2978 = vmatprep.subr.bf16.mxu0 0
    %2979 = vmatpush1.bf16.msra.mxu0 0
    %2980 = vmatprep.mubr.bf16.mxu0 0
    %2981 = vmatmul.mubr.bf16.gmra.mrb[0].mxu0 %v2876
    %v2982 = vpop.f32.mrb[0].mxu0
    %v2983 = vadd.f32 %v2898, %v2982
    %v2984 = vpop.f32.mrb[0].mxu0
    %v2985 = vpop.f32.mrb[0].mxu0
    %v2986 = vadd.f32 %v2898, %v2985
    %v2987 = vpop.f32.mrb[0].mxu0
    %2988 = vdwg.mxu0
    %v2989 = vadd.f32 %v69, %v2983
    %v2990 = vadd.f32 %v70, %v2986
    %2991 = vst [vmem:[#allocation8] sm:$0xff] %v2989
    %2992 = vst [vmem:[#allocation8 + $0x8] sm:$0xff] %v2990
    // Predicated region
    $region42: #{tpu_custom_call.1} parent=1 // pred_check
      _
    $region43: #{tpu_custom_call.1} parent=1 // pred_check_branch
      %2994 = sbr.rel (0) target = $region45
    $region44: #{tpu_custom_call.1} parent=1 // pred_region
      %s2996 = ssub.s32 256, 256
      %2997 = vsyncadd [#allocation4], %s2996
      %s2998 = sshll.u32 [#allocation8], 4
      %s2999 = int_to_ptr.vmem [resolvable:$true] %s2998
      %3004 = dma.vmem_to_hbm [thread:$0]  %s2999, 256, %s7, [#allocation4], 128, 128, 8
    $region45: #{tpu_custom_call.1} parent=1 // pred_fallthru
      _
    // Predicated region
    $region46: #{tpu_custom_call.1} parent=1 // pred_check
      _
    $region47: #{tpu_custom_call.1} parent=1 // pred_check_branch
      %3006 = sbr.rel (0) target = $region49
    $region48: #{tpu_custom_call.1} parent=1 // pred_region
      %3007 = dma.done [#allocation4], 256
    $region49: #{tpu_custom_call.1} parent=1 // pred_fallthru
      _
    %3008 = vsyncpa [#allocation3], 1
    %3009 = vsyncpa [#allocation6], 1
    %3010 = vsyncpa [#allocation4], 1

</llo_original>
